<compile_context>
chip_gen: v7x
topology: tpu7x:2x2x1
jax: 0.10.0
libtpu: 0.0.40
codegen_flags: <defaults>
</compile_context>

<pallas_src>
import functools

import jax
import jax.numpy as jnp
from jax.experimental import pallas as pl
from jax.experimental.pallas import tpu as pltpu

KERNEL_SIZE = 3
OUT_C = 3


def _fused_unfold_softmax_kernel(xp_ref, o_ref, *, C, H, W, out_c, layer_per_out):
    """One batch element per grid step.

    xp_ref: (1, C, H+2, W+2)   zero-padded input block (VMEM)
    o_ref : (1, out_c*layer_per_out, H, W) output block (VMEM)

    Builds the 3x3 unfold planes in torch.nn.Unfold channel order
    (c slowest, then kh, kw) on the fly and applies a numerically stable
    softmax over each contiguous group of `layer_per_out` channels.
    """
    kk = KERNEL_SIZE * KERNEL_SIZE
    n_out_ch = out_c * layer_per_out  # floor-div: trailing channels dropped (matches torch)

    # Gather the shifted planes (static slices of the padded block).
    planes = []
    for ch in range(n_out_ch):
        c, rem = divmod(ch, kk)
        kh, kw = divmod(rem, KERNEL_SIZE)
        planes.append(xp_ref[0, c, kh:kh + H, kw:kw + W].astype(jnp.float32))  # (H, W)

    # Grouped, max-subtracted softmax over each block of `layer_per_out` planes.
    for g in range(out_c):
        grp = planes[g * layer_per_out:(g + 1) * layer_per_out]

        m = grp[0]
        for p in grp[1:]:
            m = jnp.maximum(m, p)          # elementwise VPU max across planes

        exps = [jnp.exp(p - m) for p in grp]
        s = exps[0]
        for e in exps[1:]:
            s = s + e

        # EUP approximate reciprocal + one Newton-Raphson refinement.
        r = pl.reciprocal(s, approx=True)
        r = r * (2.0 - s * r)

        for j, e in enumerate(exps):
            o_ref[0, g * layer_per_out + j] = (e * r).astype(o_ref.dtype)


def kernel_construction(x, out_c=OUT_C):
    """x: (B, C, H, W) float32 (NCHW). Returns (B, out_c*layer_per_out, H, W)."""
    B, C, H, W = x.shape
    total_ch = C * KERNEL_SIZE * KERNEL_SIZE
    layer_per_out = total_ch // out_c          # torch floor-div semantics
    n_out_ch = out_c * layer_per_out

    # Cheap 1x-sized pad; the 9x unfold tensor is never written to HBM.
    xp = jnp.pad(x, ((0, 0), (0, 0), (1, 1), (1, 1)))

    itemsize = jnp.dtype(x.dtype).itemsize
    in_block_bytes = C * (H + 2) * (W + 2) * itemsize
    out_block_bytes = n_out_ch * H * W * itemsize
    need = 2 * (in_block_bytes + out_block_bytes)              # double-buffered in+out
    vmem_limit = int(min(48 * 2**20, max(32 * 2**20, 4 * need)))

    kernel = functools.partial(
        _fused_unfold_softmax_kernel,
        C=C, H=H, W=W, out_c=out_c, layer_per_out=layer_per_out)

    out = pl.pallas_call(
        kernel,
        out_shape=jax.ShapeDtypeStruct((B, n_out_ch, H, W), x.dtype),
        grid_spec=pltpu.PrefetchScalarGridSpec(
            num_scalar_prefetch=0,
            grid=(B,),
            in_specs=[pl.BlockSpec((1, C, H + 2, W + 2), lambda b: (b, 0, 0, 0))],
            out_specs=pl.BlockSpec((1, n_out_ch, H, W), lambda b: (b, 0, 0, 0)),
        ),
        compiler_params=pltpu.CompilerParams(
            dimension_semantics=("parallel",),
            vmem_limit_bytes=vmem_limit),
    )(xp)
    return out


if __name__ == "__main__":
    # Module has no learnable parameters (Unfold + Softmax only).
    key = jax.random.PRNGKey(0)
    x = jax.random.normal(key, (2, 4, 16, 16), dtype=jnp.float32)  # B=2, C=4, H=W=16

    y = jax.block_until_ready(jax.jit(kernel_construction)(x))

    # Shape check: C*9 = 36 channels out, same spatial size.
    assert y.shape == (2, 36, 16, 16), y.shape

    # Correctness check vs. pure-JAX reference (torch.nn.Unfold channel order,
    # softmax over each group of 12 channels).
    B, C, H, W = x.shape
    xp_ref = jnp.pad(x, ((0, 0), (0, 0), (1, 1), (1, 1)))
    patches = jnp.stack(
        [xp_ref[:, :, kh:kh + H, kw:kw + W] for kh in range(3) for kw in range(3)],
        axis=2,
    ).reshape(B, C * 9, H, W)
    L = (C * 9) // 3
    ref = jnp.concatenate(
        [jax.nn.softmax(patches[:, i * L:(i + 1) * L], axis=1) for i in range(3)],
        axis=1,
    )
    err = float(jnp.max(jnp.abs(y - ref)))
    assert jnp.allclose(y, ref, atol=1e-5, rtol=1e-5), err

    print("KERNEL_OK")
</pallas_src>

<mosaic_0001>
module attributes {stable_mosaic.version = 11 : i64} {
  func.func @_fused_unfold_softmax_kernel(%arg0: i32, %arg1: memref<1x4x18x18xf32, #tpu.memory_space<vmem>>, %arg2: memref<1x36x16x16xf32, #tpu.memory_space<vmem>>) attributes {dimension_semantics = [#tpu.dimension_semantics<parallel>], iteration_bounds = array<i64: 2>, scalar_prefetch = 0 : i64, scratch_operands = 0 : i64, tpu.core_type = #tpu.core_type<tc>, window_params = [{transform_indices = @transform_0, window_bounds = array<i64: 1, 4, 18, 18>}, {transform_indices = @transform_1, window_bounds = array<i64: 1, 36, 16, 16>}]} {
    %c0 = arith.constant 0 : index
    %c0_0 = arith.constant 0 : index
    %c0_1 = arith.constant 0 : index
    %c0_2 = arith.constant 0 : index
    %0 = vector.load %arg1[%c0, %c0_0, %c0_1, %c0_2] : memref<1x4x18x18xf32, #tpu.memory_space<vmem>>, vector<1x1x16x16xf32>
    %1 = vector.shape_cast %0 : vector<1x1x16x16xf32> to vector<16x16xf32>
    %c0_3 = arith.constant 0 : index
    %c0_4 = arith.constant 0 : index
    %c0_5 = arith.constant 0 : index
    %c1 = arith.constant 1 : index
    %2 = vector.load %arg1[%c0_3, %c0_4, %c0_5, %c1] : memref<1x4x18x18xf32, #tpu.memory_space<vmem>>, vector<1x1x16x16xf32>
    %3 = vector.shape_cast %2 : vector<1x1x16x16xf32> to vector<16x16xf32>
    %c0_6 = arith.constant 0 : index
    %c0_7 = arith.constant 0 : index
    %c0_8 = arith.constant 0 : index
    %c2 = arith.constant 2 : index
    %4 = vector.load %arg1[%c0_6, %c0_7, %c0_8, %c2] : memref<1x4x18x18xf32, #tpu.memory_space<vmem>>, vector<1x1x16x16xf32>
    %5 = vector.shape_cast %4 : vector<1x1x16x16xf32> to vector<16x16xf32>
    %c0_9 = arith.constant 0 : index
    %c0_10 = arith.constant 0 : index
    %c1_11 = arith.constant 1 : index
    %c0_12 = arith.constant 0 : index
    %6 = vector.load %arg1[%c0_9, %c0_10, %c1_11, %c0_12] : memref<1x4x18x18xf32, #tpu.memory_space<vmem>>, vector<1x1x16x16xf32>
    %7 = vector.shape_cast %6 : vector<1x1x16x16xf32> to vector<16x16xf32>
    %c0_13 = arith.constant 0 : index
    %c0_14 = arith.constant 0 : index
    %c1_15 = arith.constant 1 : index
    %c1_16 = arith.constant 1 : index
    %8 = vector.load %arg1[%c0_13, %c0_14, %c1_15, %c1_16] : memref<1x4x18x18xf32, #tpu.memory_space<vmem>>, vector<1x1x16x16xf32>
    %9 = vector.shape_cast %8 : vector<1x1x16x16xf32> to vector<16x16xf32>
    %c0_17 = arith.constant 0 : index
    %c0_18 = arith.constant 0 : index
    %c1_19 = arith.constant 1 : index
    %c2_20 = arith.constant 2 : index
    %10 = vector.load %arg1[%c0_17, %c0_18, %c1_19, %c2_20] : memref<1x4x18x18xf32, #tpu.memory_space<vmem>>, vector<1x1x16x16xf32>
    %11 = vector.shape_cast %10 : vector<1x1x16x16xf32> to vector<16x16xf32>
    %c0_21 = arith.constant 0 : index
    %c0_22 = arith.constant 0 : index
    %c2_23 = arith.constant 2 : index
    %c0_24 = arith.constant 0 : index
    %12 = vector.load %arg1[%c0_21, %c0_22, %c2_23, %c0_24] : memref<1x4x18x18xf32, #tpu.memory_space<vmem>>, vector<1x1x16x16xf32>
    %13 = vector.shape_cast %12 : vector<1x1x16x16xf32> to vector<16x16xf32>
    %c0_25 = arith.constant 0 : index
    %c0_26 = arith.constant 0 : index
    %c2_27 = arith.constant 2 : index
    %c1_28 = arith.constant 1 : index
    %14 = vector.load %arg1[%c0_25, %c0_26, %c2_27, %c1_28] : memref<1x4x18x18xf32, #tpu.memory_space<vmem>>, vector<1x1x16x16xf32>
    %15 = vector.shape_cast %14 : vector<1x1x16x16xf32> to vector<16x16xf32>
    %c0_29 = arith.constant 0 : index
    %c0_30 = arith.constant 0 : index
    %c2_31 = arith.constant 2 : index
    %c2_32 = arith.constant 2 : index
    %16 = vector.load %arg1[%c0_29, %c0_30, %c2_31, %c2_32] : memref<1x4x18x18xf32, #tpu.memory_space<vmem>>, vector<1x1x16x16xf32>
    %17 = vector.shape_cast %16 : vector<1x1x16x16xf32> to vector<16x16xf32>
    %c0_33 = arith.constant 0 : index
    %c1_34 = arith.constant 1 : index
    %c0_35 = arith.constant 0 : index
    %c0_36 = arith.constant 0 : index
    %18 = vector.load %arg1[%c0_33, %c1_34, %c0_35, %c0_36] : memref<1x4x18x18xf32, #tpu.memory_space<vmem>>, vector<1x1x16x16xf32>
    %19 = vector.shape_cast %18 : vector<1x1x16x16xf32> to vector<16x16xf32>
    %c0_37 = arith.constant 0 : index
    %c1_38 = arith.constant 1 : index
    %c0_39 = arith.constant 0 : index
    %c1_40 = arith.constant 1 : index
    %20 = vector.load %arg1[%c0_37, %c1_38, %c0_39, %c1_40] : memref<1x4x18x18xf32, #tpu.memory_space<vmem>>, vector<1x1x16x16xf32>
    %21 = vector.shape_cast %20 : vector<1x1x16x16xf32> to vector<16x16xf32>
    %c0_41 = arith.constant 0 : index
    %c1_42 = arith.constant 1 : index
    %c0_43 = arith.constant 0 : index
    %c2_44 = arith.constant 2 : index
    %22 = vector.load %arg1[%c0_41, %c1_42, %c0_43, %c2_44] : memref<1x4x18x18xf32, #tpu.memory_space<vmem>>, vector<1x1x16x16xf32>
    %23 = vector.shape_cast %22 : vector<1x1x16x16xf32> to vector<16x16xf32>
    %c0_45 = arith.constant 0 : index
    %c1_46 = arith.constant 1 : index
    %c1_47 = arith.constant 1 : index
    %c0_48 = arith.constant 0 : index
    %24 = vector.load %arg1[%c0_45, %c1_46, %c1_47, %c0_48] : memref<1x4x18x18xf32, #tpu.memory_space<vmem>>, vector<1x1x16x16xf32>
    %25 = vector.shape_cast %24 : vector<1x1x16x16xf32> to vector<16x16xf32>
    %c0_49 = arith.constant 0 : index
    %c1_50 = arith.constant 1 : index
    %c1_51 = arith.constant 1 : index
    %c1_52 = arith.constant 1 : index
    %26 = vector.load %arg1[%c0_49, %c1_50, %c1_51, %c1_52] : memref<1x4x18x18xf32, #tpu.memory_space<vmem>>, vector<1x1x16x16xf32>
    %27 = vector.shape_cast %26 : vector<1x1x16x16xf32> to vector<16x16xf32>
    %c0_53 = arith.constant 0 : index
    %c1_54 = arith.constant 1 : index
    %c1_55 = arith.constant 1 : index
    %c2_56 = arith.constant 2 : index
    %28 = vector.load %arg1[%c0_53, %c1_54, %c1_55, %c2_56] : memref<1x4x18x18xf32, #tpu.memory_space<vmem>>, vector<1x1x16x16xf32>
    %29 = vector.shape_cast %28 : vector<1x1x16x16xf32> to vector<16x16xf32>
    %c0_57 = arith.constant 0 : index
    %c1_58 = arith.constant 1 : index
    %c2_59 = arith.constant 2 : index
    %c0_60 = arith.constant 0 : index
    %30 = vector.load %arg1[%c0_57, %c1_58, %c2_59, %c0_60] : memref<1x4x18x18xf32, #tpu.memory_space<vmem>>, vector<1x1x16x16xf32>
    %31 = vector.shape_cast %30 : vector<1x1x16x16xf32> to vector<16x16xf32>
    %c0_61 = arith.constant 0 : index
    %c1_62 = arith.constant 1 : index
    %c2_63 = arith.constant 2 : index
    %c1_64 = arith.constant 1 : index
    %32 = vector.load %arg1[%c0_61, %c1_62, %c2_63, %c1_64] : memref<1x4x18x18xf32, #tpu.memory_space<vmem>>, vector<1x1x16x16xf32>
    %33 = vector.shape_cast %32 : vector<1x1x16x16xf32> to vector<16x16xf32>
    %c0_65 = arith.constant 0 : index
    %c1_66 = arith.constant 1 : index
    %c2_67 = arith.constant 2 : index
    %c2_68 = arith.constant 2 : index
    %34 = vector.load %arg1[%c0_65, %c1_66, %c2_67, %c2_68] : memref<1x4x18x18xf32, #tpu.memory_space<vmem>>, vector<1x1x16x16xf32>
    %35 = vector.shape_cast %34 : vector<1x1x16x16xf32> to vector<16x16xf32>
    %c0_69 = arith.constant 0 : index
    %c2_70 = arith.constant 2 : index
    %c0_71 = arith.constant 0 : index
    %c0_72 = arith.constant 0 : index
    %36 = vector.load %arg1[%c0_69, %c2_70, %c0_71, %c0_72] : memref<1x4x18x18xf32, #tpu.memory_space<vmem>>, vector<1x1x16x16xf32>
    %37 = vector.shape_cast %36 : vector<1x1x16x16xf32> to vector<16x16xf32>
    %c0_73 = arith.constant 0 : index
    %c2_74 = arith.constant 2 : index
    %c0_75 = arith.constant 0 : index
    %c1_76 = arith.constant 1 : index
    %38 = vector.load %arg1[%c0_73, %c2_74, %c0_75, %c1_76] : memref<1x4x18x18xf32, #tpu.memory_space<vmem>>, vector<1x1x16x16xf32>
    %39 = vector.shape_cast %38 : vector<1x1x16x16xf32> to vector<16x16xf32>
    %c0_77 = arith.constant 0 : index
    %c2_78 = arith.constant 2 : index
    %c0_79 = arith.constant 0 : index
    %c2_80 = arith.constant 2 : index
    %40 = vector.load %arg1[%c0_77, %c2_78, %c0_79, %c2_80] : memref<1x4x18x18xf32, #tpu.memory_space<vmem>>, vector<1x1x16x16xf32>
    %41 = vector.shape_cast %40 : vector<1x1x16x16xf32> to vector<16x16xf32>
    %c0_81 = arith.constant 0 : index
    %c2_82 = arith.constant 2 : index
    %c1_83 = arith.constant 1 : index
    %c0_84 = arith.constant 0 : index
    %42 = vector.load %arg1[%c0_81, %c2_82, %c1_83, %c0_84] : memref<1x4x18x18xf32, #tpu.memory_space<vmem>>, vector<1x1x16x16xf32>
    %43 = vector.shape_cast %42 : vector<1x1x16x16xf32> to vector<16x16xf32>
    %c0_85 = arith.constant 0 : index
    %c2_86 = arith.constant 2 : index
    %c1_87 = arith.constant 1 : index
    %c1_88 = arith.constant 1 : index
    %44 = vector.load %arg1[%c0_85, %c2_86, %c1_87, %c1_88] : memref<1x4x18x18xf32, #tpu.memory_space<vmem>>, vector<1x1x16x16xf32>
    %45 = vector.shape_cast %44 : vector<1x1x16x16xf32> to vector<16x16xf32>
    %c0_89 = arith.constant 0 : index
    %c2_90 = arith.constant 2 : index
    %c1_91 = arith.constant 1 : index
    %c2_92 = arith.constant 2 : index
    %46 = vector.load %arg1[%c0_89, %c2_90, %c1_91, %c2_92] : memref<1x4x18x18xf32, #tpu.memory_space<vmem>>, vector<1x1x16x16xf32>
    %47 = vector.shape_cast %46 : vector<1x1x16x16xf32> to vector<16x16xf32>
    %c0_93 = arith.constant 0 : index
    %c2_94 = arith.constant 2 : index
    %c2_95 = arith.constant 2 : index
    %c0_96 = arith.constant 0 : index
    %48 = vector.load %arg1[%c0_93, %c2_94, %c2_95, %c0_96] : memref<1x4x18x18xf32, #tpu.memory_space<vmem>>, vector<1x1x16x16xf32>
    %49 = vector.shape_cast %48 : vector<1x1x16x16xf32> to vector<16x16xf32>
    %c0_97 = arith.constant 0 : index
    %c2_98 = arith.constant 2 : index
    %c2_99 = arith.constant 2 : index
    %c1_100 = arith.constant 1 : index
    %50 = vector.load %arg1[%c0_97, %c2_98, %c2_99, %c1_100] : memref<1x4x18x18xf32, #tpu.memory_space<vmem>>, vector<1x1x16x16xf32>
    %51 = vector.shape_cast %50 : vector<1x1x16x16xf32> to vector<16x16xf32>
    %c0_101 = arith.constant 0 : index
    %c2_102 = arith.constant 2 : index
    %c2_103 = arith.constant 2 : index
    %c2_104 = arith.constant 2 : index
    %52 = vector.load %arg1[%c0_101, %c2_102, %c2_103, %c2_104] : memref<1x4x18x18xf32, #tpu.memory_space<vmem>>, vector<1x1x16x16xf32>
    %53 = vector.shape_cast %52 : vector<1x1x16x16xf32> to vector<16x16xf32>
    %c0_105 = arith.constant 0 : index
    %c3 = arith.constant 3 : index
    %c0_106 = arith.constant 0 : index
    %c0_107 = arith.constant 0 : index
    %54 = vector.load %arg1[%c0_105, %c3, %c0_106, %c0_107] : memref<1x4x18x18xf32, #tpu.memory_space<vmem>>, vector<1x1x16x16xf32>
    %55 = vector.shape_cast %54 : vector<1x1x16x16xf32> to vector<16x16xf32>
    %c0_108 = arith.constant 0 : index
    %c3_109 = arith.constant 3 : index
    %c0_110 = arith.constant 0 : index
    %c1_111 = arith.constant 1 : index
    %56 = vector.load %arg1[%c0_108, %c3_109, %c0_110, %c1_111] : memref<1x4x18x18xf32, #tpu.memory_space<vmem>>, vector<1x1x16x16xf32>
    %57 = vector.shape_cast %56 : vector<1x1x16x16xf32> to vector<16x16xf32>
    %c0_112 = arith.constant 0 : index
    %c3_113 = arith.constant 3 : index
    %c0_114 = arith.constant 0 : index
    %c2_115 = arith.constant 2 : index
    %58 = vector.load %arg1[%c0_112, %c3_113, %c0_114, %c2_115] : memref<1x4x18x18xf32, #tpu.memory_space<vmem>>, vector<1x1x16x16xf32>
    %59 = vector.shape_cast %58 : vector<1x1x16x16xf32> to vector<16x16xf32>
    %c0_116 = arith.constant 0 : index
    %c3_117 = arith.constant 3 : index
    %c1_118 = arith.constant 1 : index
    %c0_119 = arith.constant 0 : index
    %60 = vector.load %arg1[%c0_116, %c3_117, %c1_118, %c0_119] : memref<1x4x18x18xf32, #tpu.memory_space<vmem>>, vector<1x1x16x16xf32>
    %61 = vector.shape_cast %60 : vector<1x1x16x16xf32> to vector<16x16xf32>
    %c0_120 = arith.constant 0 : index
    %c3_121 = arith.constant 3 : index
    %c1_122 = arith.constant 1 : index
    %c1_123 = arith.constant 1 : index
    %62 = vector.load %arg1[%c0_120, %c3_121, %c1_122, %c1_123] : memref<1x4x18x18xf32, #tpu.memory_space<vmem>>, vector<1x1x16x16xf32>
    %63 = vector.shape_cast %62 : vector<1x1x16x16xf32> to vector<16x16xf32>
    %c0_124 = arith.constant 0 : index
    %c3_125 = arith.constant 3 : index
    %c1_126 = arith.constant 1 : index
    %c2_127 = arith.constant 2 : index
    %64 = vector.load %arg1[%c0_124, %c3_125, %c1_126, %c2_127] : memref<1x4x18x18xf32, #tpu.memory_space<vmem>>, vector<1x1x16x16xf32>
    %65 = vector.shape_cast %64 : vector<1x1x16x16xf32> to vector<16x16xf32>
    %c0_128 = arith.constant 0 : index
    %c3_129 = arith.constant 3 : index
    %c2_130 = arith.constant 2 : index
    %c0_131 = arith.constant 0 : index
    %66 = vector.load %arg1[%c0_128, %c3_129, %c2_130, %c0_131] : memref<1x4x18x18xf32, #tpu.memory_space<vmem>>, vector<1x1x16x16xf32>
    %67 = vector.shape_cast %66 : vector<1x1x16x16xf32> to vector<16x16xf32>
    %c0_132 = arith.constant 0 : index
    %c3_133 = arith.constant 3 : index
    %c2_134 = arith.constant 2 : index
    %c1_135 = arith.constant 1 : index
    %68 = vector.load %arg1[%c0_132, %c3_133, %c2_134, %c1_135] : memref<1x4x18x18xf32, #tpu.memory_space<vmem>>, vector<1x1x16x16xf32>
    %69 = vector.shape_cast %68 : vector<1x1x16x16xf32> to vector<16x16xf32>
    %c0_136 = arith.constant 0 : index
    %c3_137 = arith.constant 3 : index
    %c2_138 = arith.constant 2 : index
    %c2_139 = arith.constant 2 : index
    %70 = vector.load %arg1[%c0_136, %c3_137, %c2_138, %c2_139] : memref<1x4x18x18xf32, #tpu.memory_space<vmem>>, vector<1x1x16x16xf32>
    %71 = vector.shape_cast %70 : vector<1x1x16x16xf32> to vector<16x16xf32>
    %72 = arith.maximumf %1, %3 : vector<16x16xf32>
    %73 = arith.maximumf %72, %5 : vector<16x16xf32>
    %74 = arith.maximumf %73, %7 : vector<16x16xf32>
    %75 = arith.maximumf %74, %9 : vector<16x16xf32>
    %76 = arith.maximumf %75, %11 : vector<16x16xf32>
    %77 = arith.maximumf %76, %13 : vector<16x16xf32>
    %78 = arith.maximumf %77, %15 : vector<16x16xf32>
    %79 = arith.maximumf %78, %17 : vector<16x16xf32>
    %80 = arith.maximumf %79, %19 : vector<16x16xf32>
    %81 = arith.maximumf %80, %21 : vector<16x16xf32>
    %82 = arith.maximumf %81, %23 : vector<16x16xf32>
    %83 = arith.subf %1, %82 : vector<16x16xf32>
    %84 = math.exp %83 : vector<16x16xf32>
    %85 = arith.subf %3, %82 : vector<16x16xf32>
    %86 = math.exp %85 : vector<16x16xf32>
    %87 = arith.subf %5, %82 : vector<16x16xf32>
    %88 = math.exp %87 : vector<16x16xf32>
    %89 = arith.subf %7, %82 : vector<16x16xf32>
    %90 = math.exp %89 : vector<16x16xf32>
    %91 = arith.subf %9, %82 : vector<16x16xf32>
    %92 = math.exp %91 : vector<16x16xf32>
    %93 = arith.subf %11, %82 : vector<16x16xf32>
    %94 = math.exp %93 : vector<16x16xf32>
    %95 = arith.subf %13, %82 : vector<16x16xf32>
    %96 = math.exp %95 : vector<16x16xf32>
    %97 = arith.subf %15, %82 : vector<16x16xf32>
    %98 = math.exp %97 : vector<16x16xf32>
    %99 = arith.subf %17, %82 : vector<16x16xf32>
    %100 = math.exp %99 : vector<16x16xf32>
    %101 = arith.subf %19, %82 : vector<16x16xf32>
    %102 = math.exp %101 : vector<16x16xf32>
    %103 = arith.subf %21, %82 : vector<16x16xf32>
    %104 = math.exp %103 : vector<16x16xf32>
    %105 = arith.subf %23, %82 : vector<16x16xf32>
    %106 = math.exp %105 : vector<16x16xf32>
    %107 = arith.addf %84, %86 : vector<16x16xf32>
    %108 = arith.addf %107, %88 : vector<16x16xf32>
    %109 = arith.addf %108, %90 : vector<16x16xf32>
    %110 = arith.addf %109, %92 : vector<16x16xf32>
    %111 = arith.addf %110, %94 : vector<16x16xf32>
    %112 = arith.addf %111, %96 : vector<16x16xf32>
    %113 = arith.addf %112, %98 : vector<16x16xf32>
    %114 = arith.addf %113, %100 : vector<16x16xf32>
    %115 = arith.addf %114, %102 : vector<16x16xf32>
    %116 = arith.addf %115, %104 : vector<16x16xf32>
    %117 = arith.addf %116, %106 : vector<16x16xf32>
    %118 = tpu.reciprocal %117 {approx = true} : vector<16x16xf32> -> vector<16x16xf32>
    %119 = arith.mulf %117, %118 : vector<16x16xf32>
    %cst = arith.constant 2.000000e+00 : f32
    %120 = vector.broadcast %cst : f32 to vector<16x16xf32>
    %121 = arith.subf %120, %119 : vector<16x16xf32>
    %122 = arith.mulf %118, %121 : vector<16x16xf32>
    %123 = arith.mulf %84, %122 : vector<16x16xf32>
    %c0_140 = arith.constant 0 : index
    %c0_141 = arith.constant 0 : index
    %c0_142 = arith.constant 0 : index
    %c0_143 = arith.constant 0 : index
    %124 = vector.load %arg2[%c0_140, %c0_141, %c0_142, %c0_143] : memref<1x36x16x16xf32, #tpu.memory_space<vmem>>, vector<1x1x16x16xf32>
    %125 = vector.shape_cast %124 : vector<1x1x16x16xf32> to vector<16x16xf32>
    %126 = vector.shape_cast %123 : vector<16x16xf32> to vector<1x1x16x16xf32>
    tpu.vector_store %arg2[%c0_140, %c0_141, %c0_142, %c0_143], %126 {strides = array<i32>} : memref<1x36x16x16xf32, #tpu.memory_space<vmem>>, vector<1x1x16x16xf32>,
    %127 = arith.mulf %86, %122 : vector<16x16xf32>
    %c0_144 = arith.constant 0 : index
    %c1_145 = arith.constant 1 : index
    %c0_146 = arith.constant 0 : index
    %c0_147 = arith.constant 0 : index
    %128 = vector.load %arg2[%c0_144, %c1_145, %c0_146, %c0_147] : memref<1x36x16x16xf32, #tpu.memory_space<vmem>>, vector<1x1x16x16xf32>
    %129 = vector.shape_cast %128 : vector<1x1x16x16xf32> to vector<16x16xf32>
    %130 = vector.shape_cast %127 : vector<16x16xf32> to vector<1x1x16x16xf32>
    tpu.vector_store %arg2[%c0_144, %c1_145, %c0_146, %c0_147], %130 {strides = array<i32>} : memref<1x36x16x16xf32, #tpu.memory_space<vmem>>, vector<1x1x16x16xf32>,
    %131 = arith.mulf %88, %122 : vector<16x16xf32>
    %c0_148 = arith.constant 0 : index
    %c2_149 = arith.constant 2 : index
    %c0_150 = arith.constant 0 : index
    %c0_151 = arith.constant 0 : index
    %132 = vector.load %arg2[%c0_148, %c2_149, %c0_150, %c0_151] : memref<1x36x16x16xf32, #tpu.memory_space<vmem>>, vector<1x1x16x16xf32>
    %133 = vector.shape_cast %132 : vector<1x1x16x16xf32> to vector<16x16xf32>
    %134 = vector.shape_cast %131 : vector<16x16xf32> to vector<1x1x16x16xf32>
    tpu.vector_store %arg2[%c0_148, %c2_149, %c0_150, %c0_151], %134 {strides = array<i32>} : memref<1x36x16x16xf32, #tpu.memory_space<vmem>>, vector<1x1x16x16xf32>,
    %135 = arith.mulf %90, %122 : vector<16x16xf32>
    %c0_152 = arith.constant 0 : index
    %c3_153 = arith.constant 3 : index
    %c0_154 = arith.constant 0 : index
    %c0_155 = arith.constant 0 : index
    %136 = vector.load %arg2[%c0_152, %c3_153, %c0_154, %c0_155] : memref<1x36x16x16xf32, #tpu.memory_space<vmem>>, vector<1x1x16x16xf32>
    %137 = vector.shape_cast %136 : vector<1x1x16x16xf32> to vector<16x16xf32>
    %138 = vector.shape_cast %135 : vector<16x16xf32> to vector<1x1x16x16xf32>
    tpu.vector_store %arg2[%c0_152, %c3_153, %c0_154, %c0_155], %138 {strides = array<i32>} : memref<1x36x16x16xf32, #tpu.memory_space<vmem>>, vector<1x1x16x16xf32>,
    %139 = arith.mulf %92, %122 : vector<16x16xf32>
    %c0_156 = arith.constant 0 : index
    %c4 = arith.constant 4 : index
    %c0_157 = arith.constant 0 : index
    %c0_158 = arith.constant 0 : index
    %140 = vector.load %arg2[%c0_156, %c4, %c0_157, %c0_158] : memref<1x36x16x16xf32, #tpu.memory_space<vmem>>, vector<1x1x16x16xf32>
    %141 = vector.shape_cast %140 : vector<1x1x16x16xf32> to vector<16x16xf32>
    %142 = vector.shape_cast %139 : vector<16x16xf32> to vector<1x1x16x16xf32>
    tpu.vector_store %arg2[%c0_156, %c4, %c0_157, %c0_158], %142 {strides = array<i32>} : memref<1x36x16x16xf32, #tpu.memory_space<vmem>>, vector<1x1x16x16xf32>,
    %143 = arith.mulf %94, %122 : vector<16x16xf32>
    %c0_159 = arith.constant 0 : index
    %c5 = arith.constant 5 : index
    %c0_160 = arith.constant 0 : index
    %c0_161 = arith.constant 0 : index
    %144 = vector.load %arg2[%c0_159, %c5, %c0_160, %c0_161] : memref<1x36x16x16xf32, #tpu.memory_space<vmem>>, vector<1x1x16x16xf32>
    %145 = vector.shape_cast %144 : vector<1x1x16x16xf32> to vector<16x16xf32>
    %146 = vector.shape_cast %143 : vector<16x16xf32> to vector<1x1x16x16xf32>
    tpu.vector_store %arg2[%c0_159, %c5, %c0_160, %c0_161], %146 {strides = array<i32>} : memref<1x36x16x16xf32, #tpu.memory_space<vmem>>, vector<1x1x16x16xf32>,
    %147 = arith.mulf %96, %122 : vector<16x16xf32>
    %c0_162 = arith.constant 0 : index
    %c6 = arith.constant 6 : index
    %c0_163 = arith.constant 0 : index
    %c0_164 = arith.constant 0 : index
    %148 = vector.load %arg2[%c0_162, %c6, %c0_163, %c0_164] : memref<1x36x16x16xf32, #tpu.memory_space<vmem>>, vector<1x1x16x16xf32>
    %149 = vector.shape_cast %148 : vector<1x1x16x16xf32> to vector<16x16xf32>
    %150 = vector.shape_cast %147 : vector<16x16xf32> to vector<1x1x16x16xf32>
    tpu.vector_store %arg2[%c0_162, %c6, %c0_163, %c0_164], %150 {strides = array<i32>} : memref<1x36x16x16xf32, #tpu.memory_space<vmem>>, vector<1x1x16x16xf32>,
    %151 = arith.mulf %98, %122 : vector<16x16xf32>
    %c0_165 = arith.constant 0 : index
    %c7 = arith.constant 7 : index
    %c0_166 = arith.constant 0 : index
    %c0_167 = arith.constant 0 : index
    %152 = vector.load %arg2[%c0_165, %c7, %c0_166, %c0_167] : memref<1x36x16x16xf32, #tpu.memory_space<vmem>>, vector<1x1x16x16xf32>
    %153 = vector.shape_cast %152 : vector<1x1x16x16xf32> to vector<16x16xf32>
    %154 = vector.shape_cast %151 : vector<16x16xf32> to vector<1x1x16x16xf32>
    tpu.vector_store %arg2[%c0_165, %c7, %c0_166, %c0_167], %154 {strides = array<i32>} : memref<1x36x16x16xf32, #tpu.memory_space<vmem>>, vector<1x1x16x16xf32>,
    %155 = arith.mulf %100, %122 : vector<16x16xf32>
    %c0_168 = arith.constant 0 : index
    %c8 = arith.constant 8 : index
    %c0_169 = arith.constant 0 : index
    %c0_170 = arith.constant 0 : index
    %156 = vector.load %arg2[%c0_168, %c8, %c0_169, %c0_170] : memref<1x36x16x16xf32, #tpu.memory_space<vmem>>, vector<1x1x16x16xf32>
    %157 = vector.shape_cast %156 : vector<1x1x16x16xf32> to vector<16x16xf32>
    %158 = vector.shape_cast %155 : vector<16x16xf32> to vector<1x1x16x16xf32>
    tpu.vector_store %arg2[%c0_168, %c8, %c0_169, %c0_170], %158 {strides = array<i32>} : memref<1x36x16x16xf32, #tpu.memory_space<vmem>>, vector<1x1x16x16xf32>,
    %159 = arith.mulf %102, %122 : vector<16x16xf32>
    %c0_171 = arith.constant 0 : index
    %c9 = arith.constant 9 : index
    %c0_172 = arith.constant 0 : index
    %c0_173 = arith.constant 0 : index
    %160 = vector.load %arg2[%c0_171, %c9, %c0_172, %c0_173] : memref<1x36x16x16xf32, #tpu.memory_space<vmem>>, vector<1x1x16x16xf32>
    %161 = vector.shape_cast %160 : vector<1x1x16x16xf32> to vector<16x16xf32>
    %162 = vector.shape_cast %159 : vector<16x16xf32> to vector<1x1x16x16xf32>
    tpu.vector_store %arg2[%c0_171, %c9, %c0_172, %c0_173], %162 {strides = array<i32>} : memref<1x36x16x16xf32, #tpu.memory_space<vmem>>, vector<1x1x16x16xf32>,
    %163 = arith.mulf %104, %122 : vector<16x16xf32>
    %c0_174 = arith.constant 0 : index
    %c10 = arith.constant 10 : index
    %c0_175 = arith.constant 0 : index
    %c0_176 = arith.constant 0 : index
    %164 = vector.load %arg2[%c0_174, %c10, %c0_175, %c0_176] : memref<1x36x16x16xf32, #tpu.memory_space<vmem>>, vector<1x1x16x16xf32>
    %165 = vector.shape_cast %164 : vector<1x1x16x16xf32> to vector<16x16xf32>
    %166 = vector.shape_cast %163 : vector<16x16xf32> to vector<1x1x16x16xf32>
    tpu.vector_store %arg2[%c0_174, %c10, %c0_175, %c0_176], %166 {strides = array<i32>} : memref<1x36x16x16xf32, #tpu.memory_space<vmem>>, vector<1x1x16x16xf32>,
    %167 = arith.mulf %106, %122 : vector<16x16xf32>
    %c0_177 = arith.constant 0 : index
    %c11 = arith.constant 11 : index
    %c0_178 = arith.constant 0 : index
    %c0_179 = arith.constant 0 : index
    %168 = vector.load %arg2[%c0_177, %c11, %c0_178, %c0_179] : memref<1x36x16x16xf32, #tpu.memory_space<vmem>>, vector<1x1x16x16xf32>
    %169 = vector.shape_cast %168 : vector<1x1x16x16xf32> to vector<16x16xf32>
    %170 = vector.shape_cast %167 : vector<16x16xf32> to vector<1x1x16x16xf32>
    tpu.vector_store %arg2[%c0_177, %c11, %c0_178, %c0_179], %170 {strides = array<i32>} : memref<1x36x16x16xf32, #tpu.memory_space<vmem>>, vector<1x1x16x16xf32>,
    %171 = arith.maximumf %25, %27 : vector<16x16xf32>
    %172 = arith.maximumf %171, %29 : vector<16x16xf32>
    %173 = arith.maximumf %172, %31 : vector<16x16xf32>
    %174 = arith.maximumf %173, %33 : vector<16x16xf32>
    %175 = arith.maximumf %174, %35 : vector<16x16xf32>
    %176 = arith.maximumf %175, %37 : vector<16x16xf32>
    %177 = arith.maximumf %176, %39 : vector<16x16xf32>
    %178 = arith.maximumf %177, %41 : vector<16x16xf32>
    %179 = arith.maximumf %178, %43 : vector<16x16xf32>
    %180 = arith.maximumf %179, %45 : vector<16x16xf32>
    %181 = arith.maximumf %180, %47 : vector<16x16xf32>
    %182 = arith.subf %25, %181 : vector<16x16xf32>
    %183 = math.exp %182 : vector<16x16xf32>
    %184 = arith.subf %27, %181 : vector<16x16xf32>
    %185 = math.exp %184 : vector<16x16xf32>
    %186 = arith.subf %29, %181 : vector<16x16xf32>
    %187 = math.exp %186 : vector<16x16xf32>
    %188 = arith.subf %31, %181 : vector<16x16xf32>
    %189 = math.exp %188 : vector<16x16xf32>
    %190 = arith.subf %33, %181 : vector<16x16xf32>
    %191 = math.exp %190 : vector<16x16xf32>
    %192 = arith.subf %35, %181 : vector<16x16xf32>
    %193 = math.exp %192 : vector<16x16xf32>
    %194 = arith.subf %37, %181 : vector<16x16xf32>
    %195 = math.exp %194 : vector<16x16xf32>
    %196 = arith.subf %39, %181 : vector<16x16xf32>
    %197 = math.exp %196 : vector<16x16xf32>
    %198 = arith.subf %41, %181 : vector<16x16xf32>
    %199 = math.exp %198 : vector<16x16xf32>
    %200 = arith.subf %43, %181 : vector<16x16xf32>
    %201 = math.exp %200 : vector<16x16xf32>
    %202 = arith.subf %45, %181 : vector<16x16xf32>
    %203 = math.exp %202 : vector<16x16xf32>
    %204 = arith.subf %47, %181 : vector<16x16xf32>
    %205 = math.exp %204 : vector<16x16xf32>
    %206 = arith.addf %183, %185 : vector<16x16xf32>
    %207 = arith.addf %206, %187 : vector<16x16xf32>
    %208 = arith.addf %207, %189 : vector<16x16xf32>
    %209 = arith.addf %208, %191 : vector<16x16xf32>
    %210 = arith.addf %209, %193 : vector<16x16xf32>
    %211 = arith.addf %210, %195 : vector<16x16xf32>
    %212 = arith.addf %211, %197 : vector<16x16xf32>
    %213 = arith.addf %212, %199 : vector<16x16xf32>
    %214 = arith.addf %213, %201 : vector<16x16xf32>
    %215 = arith.addf %214, %203 : vector<16x16xf32>
    %216 = arith.addf %215, %205 : vector<16x16xf32>
    %217 = tpu.reciprocal %216 {approx = true} : vector<16x16xf32> -> vector<16x16xf32>
    %218 = arith.mulf %216, %217 : vector<16x16xf32>
    %cst_180 = arith.constant 2.000000e+00 : f32
    %219 = vector.broadcast %cst_180 : f32 to vector<16x16xf32>
    %220 = arith.subf %219, %218 : vector<16x16xf32>
    %221 = arith.mulf %217, %220 : vector<16x16xf32>
    %222 = arith.mulf %183, %221 : vector<16x16xf32>
    %c0_181 = arith.constant 0 : index
    %c12 = arith.constant 12 : index
    %c0_182 = arith.constant 0 : index
    %c0_183 = arith.constant 0 : index
    %223 = vector.load %arg2[%c0_181, %c12, %c0_182, %c0_183] : memref<1x36x16x16xf32, #tpu.memory_space<vmem>>, vector<1x1x16x16xf32>
    %224 = vector.shape_cast %223 : vector<1x1x16x16xf32> to vector<16x16xf32>
    %225 = vector.shape_cast %222 : vector<16x16xf32> to vector<1x1x16x16xf32>
    tpu.vector_store %arg2[%c0_181, %c12, %c0_182, %c0_183], %225 {strides = array<i32>} : memref<1x36x16x16xf32, #tpu.memory_space<vmem>>, vector<1x1x16x16xf32>,
    %226 = arith.mulf %185, %221 : vector<16x16xf32>
    %c0_184 = arith.constant 0 : index
    %c13 = arith.constant 13 : index
    %c0_185 = arith.constant 0 : index
    %c0_186 = arith.constant 0 : index
    %227 = vector.load %arg2[%c0_184, %c13, %c0_185, %c0_186] : memref<1x36x16x16xf32, #tpu.memory_space<vmem>>, vector<1x1x16x16xf32>
    %228 = vector.shape_cast %227 : vector<1x1x16x16xf32> to vector<16x16xf32>
    %229 = vector.shape_cast %226 : vector<16x16xf32> to vector<1x1x16x16xf32>
    tpu.vector_store %arg2[%c0_184, %c13, %c0_185, %c0_186], %229 {strides = array<i32>} : memref<1x36x16x16xf32, #tpu.memory_space<vmem>>, vector<1x1x16x16xf32>,
    %230 = arith.mulf %187, %221 : vector<16x16xf32>
    %c0_187 = arith.constant 0 : index
    %c14 = arith.constant 14 : index
    %c0_188 = arith.constant 0 : index
    %c0_189 = arith.constant 0 : index
    %231 = vector.load %arg2[%c0_187, %c14, %c0_188, %c0_189] : memref<1x36x16x16xf32, #tpu.memory_space<vmem>>, vector<1x1x16x16xf32>
    %232 = vector.shape_cast %231 : vector<1x1x16x16xf32> to vector<16x16xf32>
    %233 = vector.shape_cast %230 : vector<16x16xf32> to vector<1x1x16x16xf32>
    tpu.vector_store %arg2[%c0_187, %c14, %c0_188, %c0_189], %233 {strides = array<i32>} : memref<1x36x16x16xf32, #tpu.memory_space<vmem>>, vector<1x1x16x16xf32>,
    %234 = arith.mulf %189, %221 : vector<16x16xf32>
    %c0_190 = arith.constant 0 : index
    %c15 = arith.constant 15 : index
    %c0_191 = arith.constant 0 : index
    %c0_192 = arith.constant 0 : index
    %235 = vector.load %arg2[%c0_190, %c15, %c0_191, %c0_192] : memref<1x36x16x16xf32, #tpu.memory_space<vmem>>, vector<1x1x16x16xf32>
    %236 = vector.shape_cast %235 : vector<1x1x16x16xf32> to vector<16x16xf32>
    %237 = vector.shape_cast %234 : vector<16x16xf32> to vector<1x1x16x16xf32>
    tpu.vector_store %arg2[%c0_190, %c15, %c0_191, %c0_192], %237 {strides = array<i32>} : memref<1x36x16x16xf32, #tpu.memory_space<vmem>>, vector<1x1x16x16xf32>,
    %238 = arith.mulf %191, %221 : vector<16x16xf32>
    %c0_193 = arith.constant 0 : index
    %c16 = arith.constant 16 : index
    %c0_194 = arith.constant 0 : index
    %c0_195 = arith.constant 0 : index
    %239 = vector.load %arg2[%c0_193, %c16, %c0_194, %c0_195] : memref<1x36x16x16xf32, #tpu.memory_space<vmem>>, vector<1x1x16x16xf32>
    %240 = vector.shape_cast %239 : vector<1x1x16x16xf32> to vector<16x16xf32>
    %241 = vector.shape_cast %238 : vector<16x16xf32> to vector<1x1x16x16xf32>
    tpu.vector_store %arg2[%c0_193, %c16, %c0_194, %c0_195], %241 {strides = array<i32>} : memref<1x36x16x16xf32, #tpu.memory_space<vmem>>, vector<1x1x16x16xf32>,
    %242 = arith.mulf %193, %221 : vector<16x16xf32>
    %c0_196 = arith.constant 0 : index
    %c17 = arith.constant 17 : index
    %c0_197 = arith.constant 0 : index
    %c0_198 = arith.constant 0 : index
    %243 = vector.load %arg2[%c0_196, %c17, %c0_197, %c0_198] : memref<1x36x16x16xf32, #tpu.memory_space<vmem>>, vector<1x1x16x16xf32>
    %244 = vector.shape_cast %243 : vector<1x1x16x16xf32> to vector<16x16xf32>
    %245 = vector.shape_cast %242 : vector<16x16xf32> to vector<1x1x16x16xf32>
    tpu.vector_store %arg2[%c0_196, %c17, %c0_197, %c0_198], %245 {strides = array<i32>} : memref<1x36x16x16xf32, #tpu.memory_space<vmem>>, vector<1x1x16x16xf32>,
    %246 = arith.mulf %195, %221 : vector<16x16xf32>
    %c0_199 = arith.constant 0 : index
    %c18 = arith.constant 18 : index
    %c0_200 = arith.constant 0 : index
    %c0_201 = arith.constant 0 : index
    %247 = vector.load %arg2[%c0_199, %c18, %c0_200, %c0_201] : memref<1x36x16x16xf32, #tpu.memory_space<vmem>>, vector<1x1x16x16xf32>
    %248 = vector.shape_cast %247 : vector<1x1x16x16xf32> to vector<16x16xf32>
    %249 = vector.shape_cast %246 : vector<16x16xf32> to vector<1x1x16x16xf32>
    tpu.vector_store %arg2[%c0_199, %c18, %c0_200, %c0_201], %249 {strides = array<i32>} : memref<1x36x16x16xf32, #tpu.memory_space<vmem>>, vector<1x1x16x16xf32>,
    %250 = arith.mulf %197, %221 : vector<16x16xf32>
    %c0_202 = arith.constant 0 : index
    %c19 = arith.constant 19 : index
    %c0_203 = arith.constant 0 : index
    %c0_204 = arith.constant 0 : index
    %251 = vector.load %arg2[%c0_202, %c19, %c0_203, %c0_204] : memref<1x36x16x16xf32, #tpu.memory_space<vmem>>, vector<1x1x16x16xf32>
    %252 = vector.shape_cast %251 : vector<1x1x16x16xf32> to vector<16x16xf32>
    %253 = vector.shape_cast %250 : vector<16x16xf32> to vector<1x1x16x16xf32>
    tpu.vector_store %arg2[%c0_202, %c19, %c0_203, %c0_204], %253 {strides = array<i32>} : memref<1x36x16x16xf32, #tpu.memory_space<vmem>>, vector<1x1x16x16xf32>,
    %254 = arith.mulf %199, %221 : vector<16x16xf32>
    %c0_205 = arith.constant 0 : index
    %c20 = arith.constant 20 : index
    %c0_206 = arith.constant 0 : index
    %c0_207 = arith.constant 0 : index
    %255 = vector.load %arg2[%c0_205, %c20, %c0_206, %c0_207] : memref<1x36x16x16xf32, #tpu.memory_space<vmem>>, vector<1x1x16x16xf32>
    %256 = vector.shape_cast %255 : vector<1x1x16x16xf32> to vector<16x16xf32>
    %257 = vector.shape_cast %254 : vector<16x16xf32> to vector<1x1x16x16xf32>
    tpu.vector_store %arg2[%c0_205, %c20, %c0_206, %c0_207], %257 {strides = array<i32>} : memref<1x36x16x16xf32, #tpu.memory_space<vmem>>, vector<1x1x16x16xf32>,
    %258 = arith.mulf %201, %221 : vector<16x16xf32>
    %c0_208 = arith.constant 0 : index
    %c21 = arith.constant 21 : index
    %c0_209 = arith.constant 0 : index
    %c0_210 = arith.constant 0 : index
    %259 = vector.load %arg2[%c0_208, %c21, %c0_209, %c0_210] : memref<1x36x16x16xf32, #tpu.memory_space<vmem>>, vector<1x1x16x16xf32>
    %260 = vector.shape_cast %259 : vector<1x1x16x16xf32> to vector<16x16xf32>
    %261 = vector.shape_cast %258 : vector<16x16xf32> to vector<1x1x16x16xf32>
    tpu.vector_store %arg2[%c0_208, %c21, %c0_209, %c0_210], %261 {strides = array<i32>} : memref<1x36x16x16xf32, #tpu.memory_space<vmem>>, vector<1x1x16x16xf32>,
    %262 = arith.mulf %203, %221 : vector<16x16xf32>
    %c0_211 = arith.constant 0 : index
    %c22 = arith.constant 22 : index
    %c0_212 = arith.constant 0 : index
    %c0_213 = arith.constant 0 : index
    %263 = vector.load %arg2[%c0_211, %c22, %c0_212, %c0_213] : memref<1x36x16x16xf32, #tpu.memory_space<vmem>>, vector<1x1x16x16xf32>
    %264 = vector.shape_cast %263 : vector<1x1x16x16xf32> to vector<16x16xf32>
    %265 = vector.shape_cast %262 : vector<16x16xf32> to vector<1x1x16x16xf32>
    tpu.vector_store %arg2[%c0_211, %c22, %c0_212, %c0_213], %265 {strides = array<i32>} : memref<1x36x16x16xf32, #tpu.memory_space<vmem>>, vector<1x1x16x16xf32>,
    %266 = arith.mulf %205, %221 : vector<16x16xf32>
    %c0_214 = arith.constant 0 : index
    %c23 = arith.constant 23 : index
    %c0_215 = arith.constant 0 : index
    %c0_216 = arith.constant 0 : index
    %267 = vector.load %arg2[%c0_214, %c23, %c0_215, %c0_216] : memref<1x36x16x16xf32, #tpu.memory_space<vmem>>, vector<1x1x16x16xf32>
    %268 = vector.shape_cast %267 : vector<1x1x16x16xf32> to vector<16x16xf32>
    %269 = vector.shape_cast %266 : vector<16x16xf32> to vector<1x1x16x16xf32>
    tpu.vector_store %arg2[%c0_214, %c23, %c0_215, %c0_216], %269 {strides = array<i32>} : memref<1x36x16x16xf32, #tpu.memory_space<vmem>>, vector<1x1x16x16xf32>,
    %270 = arith.maximumf %49, %51 : vector<16x16xf32>
    %271 = arith.maximumf %270, %53 : vector<16x16xf32>
    %272 = arith.maximumf %271, %55 : vector<16x16xf32>
    %273 = arith.maximumf %272, %57 : vector<16x16xf32>
    %274 = arith.maximumf %273, %59 : vector<16x16xf32>
    %275 = arith.maximumf %274, %61 : vector<16x16xf32>
    %276 = arith.maximumf %275, %63 : vector<16x16xf32>
    %277 = arith.maximumf %276, %65 : vector<16x16xf32>
    %278 = arith.maximumf %277, %67 : vector<16x16xf32>
    %279 = arith.maximumf %278, %69 : vector<16x16xf32>
    %280 = arith.maximumf %279, %71 : vector<16x16xf32>
    %281 = arith.subf %49, %280 : vector<16x16xf32>
    %282 = math.exp %281 : vector<16x16xf32>
    %283 = arith.subf %51, %280 : vector<16x16xf32>
    %284 = math.exp %283 : vector<16x16xf32>
    %285 = arith.subf %53, %280 : vector<16x16xf32>
    %286 = math.exp %285 : vector<16x16xf32>
    %287 = arith.subf %55, %280 : vector<16x16xf32>
    %288 = math.exp %287 : vector<16x16xf32>
    %289 = arith.subf %57, %280 : vector<16x16xf32>
    %290 = math.exp %289 : vector<16x16xf32>
    %291 = arith.subf %59, %280 : vector<16x16xf32>
    %292 = math.exp %291 : vector<16x16xf32>
    %293 = arith.subf %61, %280 : vector<16x16xf32>
    %294 = math.exp %293 : vector<16x16xf32>
    %295 = arith.subf %63, %280 : vector<16x16xf32>
    %296 = math.exp %295 : vector<16x16xf32>
    %297 = arith.subf %65, %280 : vector<16x16xf32>
    %298 = math.exp %297 : vector<16x16xf32>
    %299 = arith.subf %67, %280 : vector<16x16xf32>
    %300 = math.exp %299 : vector<16x16xf32>
    %301 = arith.subf %69, %280 : vector<16x16xf32>
    %302 = math.exp %301 : vector<16x16xf32>
    %303 = arith.subf %71, %280 : vector<16x16xf32>
    %304 = math.exp %303 : vector<16x16xf32>
    %305 = arith.addf %282, %284 : vector<16x16xf32>
    %306 = arith.addf %305, %286 : vector<16x16xf32>
    %307 = arith.addf %306, %288 : vector<16x16xf32>
    %308 = arith.addf %307, %290 : vector<16x16xf32>
    %309 = arith.addf %308, %292 : vector<16x16xf32>
    %310 = arith.addf %309, %294 : vector<16x16xf32>
    %311 = arith.addf %310, %296 : vector<16x16xf32>
    %312 = arith.addf %311, %298 : vector<16x16xf32>
    %313 = arith.addf %312, %300 : vector<16x16xf32>
    %314 = arith.addf %313, %302 : vector<16x16xf32>
    %315 = arith.addf %314, %304 : vector<16x16xf32>
    %316 = tpu.reciprocal %315 {approx = true} : vector<16x16xf32> -> vector<16x16xf32>
    %317 = arith.mulf %315, %316 : vector<16x16xf32>
    %cst_217 = arith.constant 2.000000e+00 : f32
    %318 = vector.broadcast %cst_217 : f32 to vector<16x16xf32>
    %319 = arith.subf %318, %317 : vector<16x16xf32>
    %320 = arith.mulf %316, %319 : vector<16x16xf32>
    %321 = arith.mulf %282, %320 : vector<16x16xf32>
    %c0_218 = arith.constant 0 : index
    %c24 = arith.constant 24 : index
    %c0_219 = arith.constant 0 : index
    %c0_220 = arith.constant 0 : index
    %322 = vector.load %arg2[%c0_218, %c24, %c0_219, %c0_220] : memref<1x36x16x16xf32, #tpu.memory_space<vmem>>, vector<1x1x16x16xf32>
    %323 = vector.shape_cast %322 : vector<1x1x16x16xf32> to vector<16x16xf32>
    %324 = vector.shape_cast %321 : vector<16x16xf32> to vector<1x1x16x16xf32>
    tpu.vector_store %arg2[%c0_218, %c24, %c0_219, %c0_220], %324 {strides = array<i32>} : memref<1x36x16x16xf32, #tpu.memory_space<vmem>>, vector<1x1x16x16xf32>,
    %325 = arith.mulf %284, %320 : vector<16x16xf32>
    %c0_221 = arith.constant 0 : index
    %c25 = arith.constant 25 : index
    %c0_222 = arith.constant 0 : index
    %c0_223 = arith.constant 0 : index
    %326 = vector.load %arg2[%c0_221, %c25, %c0_222, %c0_223] : memref<1x36x16x16xf32, #tpu.memory_space<vmem>>, vector<1x1x16x16xf32>
    %327 = vector.shape_cast %326 : vector<1x1x16x16xf32> to vector<16x16xf32>
    %328 = vector.shape_cast %325 : vector<16x16xf32> to vector<1x1x16x16xf32>
    tpu.vector_store %arg2[%c0_221, %c25, %c0_222, %c0_223], %328 {strides = array<i32>} : memref<1x36x16x16xf32, #tpu.memory_space<vmem>>, vector<1x1x16x16xf32>,
    %329 = arith.mulf %286, %320 : vector<16x16xf32>
    %c0_224 = arith.constant 0 : index
    %c26 = arith.constant 26 : index
    %c0_225 = arith.constant 0 : index
    %c0_226 = arith.constant 0 : index
    %330 = vector.load %arg2[%c0_224, %c26, %c0_225, %c0_226] : memref<1x36x16x16xf32, #tpu.memory_space<vmem>>, vector<1x1x16x16xf32>
    %331 = vector.shape_cast %330 : vector<1x1x16x16xf32> to vector<16x16xf32>
    %332 = vector.shape_cast %329 : vector<16x16xf32> to vector<1x1x16x16xf32>
    tpu.vector_store %arg2[%c0_224, %c26, %c0_225, %c0_226], %332 {strides = array<i32>} : memref<1x36x16x16xf32, #tpu.memory_space<vmem>>, vector<1x1x16x16xf32>,
    %333 = arith.mulf %288, %320 : vector<16x16xf32>
    %c0_227 = arith.constant 0 : index
    %c27 = arith.constant 27 : index
    %c0_228 = arith.constant 0 : index
    %c0_229 = arith.constant 0 : index
    %334 = vector.load %arg2[%c0_227, %c27, %c0_228, %c0_229] : memref<1x36x16x16xf32, #tpu.memory_space<vmem>>, vector<1x1x16x16xf32>
    %335 = vector.shape_cast %334 : vector<1x1x16x16xf32> to vector<16x16xf32>
    %336 = vector.shape_cast %333 : vector<16x16xf32> to vector<1x1x16x16xf32>
    tpu.vector_store %arg2[%c0_227, %c27, %c0_228, %c0_229], %336 {strides = array<i32>} : memref<1x36x16x16xf32, #tpu.memory_space<vmem>>, vector<1x1x16x16xf32>,
    %337 = arith.mulf %290, %320 : vector<16x16xf32>
    %c0_230 = arith.constant 0 : index
    %c28 = arith.constant 28 : index
    %c0_231 = arith.constant 0 : index
    %c0_232 = arith.constant 0 : index
    %338 = vector.load %arg2[%c0_230, %c28, %c0_231, %c0_232] : memref<1x36x16x16xf32, #tpu.memory_space<vmem>>, vector<1x1x16x16xf32>
    %339 = vector.shape_cast %338 : vector<1x1x16x16xf32> to vector<16x16xf32>
    %340 = vector.shape_cast %337 : vector<16x16xf32> to vector<1x1x16x16xf32>
    tpu.vector_store %arg2[%c0_230, %c28, %c0_231, %c0_232], %340 {strides = array<i32>} : memref<1x36x16x16xf32, #tpu.memory_space<vmem>>, vector<1x1x16x16xf32>,
    %341 = arith.mulf %292, %320 : vector<16x16xf32>
    %c0_233 = arith.constant 0 : index
    %c29 = arith.constant 29 : index
    %c0_234 = arith.constant 0 : index
    %c0_235 = arith.constant 0 : index
    %342 = vector.load %arg2[%c0_233, %c29, %c0_234, %c0_235] : memref<1x36x16x16xf32, #tpu.memory_space<vmem>>, vector<1x1x16x16xf32>
    %343 = vector.shape_cast %342 : vector<1x1x16x16xf32> to vector<16x16xf32>
    %344 = vector.shape_cast %341 : vector<16x16xf32> to vector<1x1x16x16xf32>
    tpu.vector_store %arg2[%c0_233, %c29, %c0_234, %c0_235], %344 {strides = array<i32>} : memref<1x36x16x16xf32, #tpu.memory_space<vmem>>, vector<1x1x16x16xf32>,
    %345 = arith.mulf %294, %320 : vector<16x16xf32>
    %c0_236 = arith.constant 0 : index
    %c30 = arith.constant 30 : index
    %c0_237 = arith.constant 0 : index
    %c0_238 = arith.constant 0 : index
    %346 = vector.load %arg2[%c0_236, %c30, %c0_237, %c0_238] : memref<1x36x16x16xf32, #tpu.memory_space<vmem>>, vector<1x1x16x16xf32>
    %347 = vector.shape_cast %346 : vector<1x1x16x16xf32> to vector<16x16xf32>
    %348 = vector.shape_cast %345 : vector<16x16xf32> to vector<1x1x16x16xf32>
    tpu.vector_store %arg2[%c0_236, %c30, %c0_237, %c0_238], %348 {strides = array<i32>} : memref<1x36x16x16xf32, #tpu.memory_space<vmem>>, vector<1x1x16x16xf32>,
    %349 = arith.mulf %296, %320 : vector<16x16xf32>
    %c0_239 = arith.constant 0 : index
    %c31 = arith.constant 31 : index
    %c0_240 = arith.constant 0 : index
    %c0_241 = arith.constant 0 : index
    %350 = vector.load %arg2[%c0_239, %c31, %c0_240, %c0_241] : memref<1x36x16x16xf32, #tpu.memory_space<vmem>>, vector<1x1x16x16xf32>
    %351 = vector.shape_cast %350 : vector<1x1x16x16xf32> to vector<16x16xf32>
    %352 = vector.shape_cast %349 : vector<16x16xf32> to vector<1x1x16x16xf32>
    tpu.vector_store %arg2[%c0_239, %c31, %c0_240, %c0_241], %352 {strides = array<i32>} : memref<1x36x16x16xf32, #tpu.memory_space<vmem>>, vector<1x1x16x16xf32>,
    %353 = arith.mulf %298, %320 : vector<16x16xf32>
    %c0_242 = arith.constant 0 : index
    %c32 = arith.constant 32 : index
    %c0_243 = arith.constant 0 : index
    %c0_244 = arith.constant 0 : index
    %354 = vector.load %arg2[%c0_242, %c32, %c0_243, %c0_244] : memref<1x36x16x16xf32, #tpu.memory_space<vmem>>, vector<1x1x16x16xf32>
    %355 = vector.shape_cast %354 : vector<1x1x16x16xf32> to vector<16x16xf32>
    %356 = vector.shape_cast %353 : vector<16x16xf32> to vector<1x1x16x16xf32>
    tpu.vector_store %arg2[%c0_242, %c32, %c0_243, %c0_244], %356 {strides = array<i32>} : memref<1x36x16x16xf32, #tpu.memory_space<vmem>>, vector<1x1x16x16xf32>,
    %357 = arith.mulf %300, %320 : vector<16x16xf32>
    %c0_245 = arith.constant 0 : index
    %c33 = arith.constant 33 : index
    %c0_246 = arith.constant 0 : index
    %c0_247 = arith.constant 0 : index
    %358 = vector.load %arg2[%c0_245, %c33, %c0_246, %c0_247] : memref<1x36x16x16xf32, #tpu.memory_space<vmem>>, vector<1x1x16x16xf32>
    %359 = vector.shape_cast %358 : vector<1x1x16x16xf32> to vector<16x16xf32>
    %360 = vector.shape_cast %357 : vector<16x16xf32> to vector<1x1x16x16xf32>
    tpu.vector_store %arg2[%c0_245, %c33, %c0_246, %c0_247], %360 {strides = array<i32>} : memref<1x36x16x16xf32, #tpu.memory_space<vmem>>, vector<1x1x16x16xf32>,
    %361 = arith.mulf %302, %320 : vector<16x16xf32>
    %c0_248 = arith.constant 0 : index
    %c34 = arith.constant 34 : index
    %c0_249 = arith.constant 0 : index
    %c0_250 = arith.constant 0 : index
    %362 = vector.load %arg2[%c0_248, %c34, %c0_249, %c0_250] : memref<1x36x16x16xf32, #tpu.memory_space<vmem>>, vector<1x1x16x16xf32>
    %363 = vector.shape_cast %362 : vector<1x1x16x16xf32> to vector<16x16xf32>
    %364 = vector.shape_cast %361 : vector<16x16xf32> to vector<1x1x16x16xf32>
    tpu.vector_store %arg2[%c0_248, %c34, %c0_249, %c0_250], %364 {strides = array<i32>} : memref<1x36x16x16xf32, #tpu.memory_space<vmem>>, vector<1x1x16x16xf32>,
    %365 = arith.mulf %304, %320 : vector<16x16xf32>
    %c0_251 = arith.constant 0 : index
    %c35 = arith.constant 35 : index
    %c0_252 = arith.constant 0 : index
    %c0_253 = arith.constant 0 : index
    %366 = vector.load %arg2[%c0_251, %c35, %c0_252, %c0_253] : memref<1x36x16x16xf32, #tpu.memory_space<vmem>>, vector<1x1x16x16xf32>
    %367 = vector.shape_cast %366 : vector<1x1x16x16xf32> to vector<16x16xf32>
    %368 = vector.shape_cast %365 : vector<16x16xf32> to vector<1x1x16x16xf32>
    tpu.vector_store %arg2[%c0_251, %c35, %c0_252, %c0_253], %368 {strides = array<i32>} : memref<1x36x16x16xf32, #tpu.memory_space<vmem>>, vector<1x1x16x16xf32>,
    return
  }
  func.func @transform_0(%arg0: i32) -> (i32, i32, i32, i32) {
    %c0_i32 = arith.constant 0 : i32
    %c0_i32_0 = arith.constant 0 : i32
    %c0_i32_1 = arith.constant 0 : i32
    %c0_i32_2 = arith.constant 0 : i32
    return %arg0, %c0_i32, %c0_i32_0, %c0_i32_1 : i32, i32, i32, i32
  }
  func.func @transform_1(%arg0: i32) -> (i32, i32, i32, i32) {
    %c0_i32 = arith.constant 0 : i32
    %c0_i32_0 = arith.constant 0 : i32
    %c0_i32_1 = arith.constant 0 : i32
    %c0_i32_2 = arith.constant 0 : i32
    return %arg0, %c0_i32, %c0_i32_0, %c0_i32_1 : i32, i32, i32, i32
  }
}

</mosaic_0001>

<llo_original>
// kernel: kernel_construction.1
$region0: #{kernel_construction.1}
  #allocation0 [shape = 'u32[]', space=smem, size = 0x4, offset = 0x4, fixed_abs, tag = 'smem constant byte address 0x4 - core index']
  #allocation1 [shape = 'u32[144,128]{1,0:T(1,128)}', space=vmem, size = 0x12000, scoped, tag = 'internal scratch']
  %s0 = inlined_call_operand.vmem [shape: f32[2,4,18,18], index: 0, kind: input, shape index: {}]
  %s1 = inlined_call_operand.vmem [shape: f32[2,36,16,16], index: 1, kind: output, shape index: {}]
  %s2 = sld [smem:[#allocation0]]
  $region37: #{kernel_construction.1} parent=0
    _
  %s4 = ssub.s32 1, %s2
  %s5 = scalar_select 0, %s4, %s2
  loop: start=0, step=1, limit=4
  $region2: #{kernel_construction.1} parent=0 // loop_pre_header
    _
  $region3: #{kernel_construction.1} parent=0 // loop_header
    %s7 = sphi 0, %s11
    %p8 = scmp.ge.s32.totalorder %s7, 4
    %s17 = sphi 0, %s19
    %s20 = sphi 0, %s17
    %s21 = sphi 0, %s20
    %s37 = sphi 0, %s21
    %s43 = sphi 0, %s45
    %s46 = sphi 0, %s43
    %s47 = sphi 0, %s46
    %s63 = sphi 0, %s47
  $region4: #{kernel_construction.1} parent=0 // loop_header_branch
    %10 = sbr.rel (%p8) target = $region8
  $region5: #{kernel_construction.1} parent=0 // loop_body
    %s12 = ssub.s32 %s7, 1
    %s13 = ssub.s32 %s7, 2
    %s14 = sadd.s32 %s7, 1
    %s15 = ssub.s32 %s7, %s14
    %p16 = scmp.eq.s32.totalorder %s15, 0
    %s18 = sadd.s32 %s17, 1
    %s19 = scalar_select %p16, %s17, %s18
    %p22 = pneg %p16
    %p23 = scmp.eq.s32.totalorder %s7, 1
    %p24 = por %p22, %p23
    %p25 = scmp.ne.s32.totalorder %s17, %s20
    %p26 = scmp.eq.s32.totalorder %s7, 0
    %p27 = por %p25, %p26
    %p28 = scmp.ne.s32.totalorder %s17, %s20
    %p29 = scmp.eq.s32.totalorder %s12, 1
    %p30 = por %p28, %p29
    %p31 = scmp.ne.s32.totalorder %s20, %s21
    %p32 = scmp.eq.s32.totalorder %s12, 0
    %p33 = por %p31, %p32
    %p34 = scmp.ne.s32.totalorder %s20, %s21
    %p35 = scmp.eq.s32.totalorder %s13, 1
    %p36 = por %p34, %p35
    %p38 = scmp.ne.s32.totalorder %s21, %s37
    %p39 = scmp.eq.s32.totalorder %s13, 0
    %p40 = por %p38, %p39
    %s41 = ssub.s32 %s7, %s14
    %p42 = scmp.eq.s32.totalorder %s41, 0
    %s44 = sadd.s32 %s43, 1
    %s45 = scalar_select %p42, %s43, %s44
    %p48 = pneg %p42
    %p49 = scmp.eq.s32.totalorder %s7, 1
    %p50 = por %p48, %p49
    %p51 = scmp.ne.s32.totalorder %s43, %s46
    %p52 = scmp.eq.s32.totalorder %s7, 0
    %p53 = por %p51, %p52
    %p54 = scmp.ne.s32.totalorder %s43, %s46
    %p55 = scmp.eq.s32.totalorder %s12, 1
    %p56 = por %p54, %p55
    %p57 = scmp.ne.s32.totalorder %s46, %s47
    %p58 = scmp.eq.s32.totalorder %s12, 0
    %p59 = por %p57, %p58
    %p60 = scmp.ne.s32.totalorder %s46, %s47
    %p61 = scmp.eq.s32.totalorder %s13, 1
    %p62 = por %p60, %p61
    %p64 = scmp.ne.s32.totalorder %s47, %s63
    %p65 = scmp.eq.s32.totalorder %s13, 0
    %p66 = por %p64, %p65
    %p67 = scmp.le.s32.totalorder 1, %s7
    %p68 = scmp.lt.s32.totalorder %s7, 3
    %p69 = pnand %p67, %p68
    %p70 = pneg %p69
    // Predicated region
    $region9: #{kernel_construction.1} parent=5 // pred_check
      _
    $region10: #{kernel_construction.1} parent=5 // pred_check_branch
      %72 = sbr.rel (%p69) target = $region12
    $region11: #{kernel_construction.1} parent=5 // pred_region
      %s73 = ssub.s32 %s7, 1
    $region12: #{kernel_construction.1} parent=5 // pred_fallthru
      _
    %p74 = scmp.lt.s32.totalorder %s7, 2
    // Predicated region
    $region13: #{kernel_construction.1} parent=5 // pred_check
      %p75 = pneg %p74
    $region14: #{kernel_construction.1} parent=5 // pred_check_branch
      %77 = sbr.rel (%p75) target = $region16
    $region15: #{kernel_construction.1} parent=5 // pred_region
      // Predicated region
      $region17: #{kernel_construction.1} parent=15 // pred_check
        %p78 = pneg %p27
      $region18: #{kernel_construction.1} parent=15 // pred_check_branch
        %80 = sbr.rel (%p78) target = $region20
      $region19: #{kernel_construction.1} parent=15 // pred_region
        %p81 = scmp.lt.s32.totalorder %s7, 1
        %s82 = scalar_select %p81, %s7, 1
        %s83 = smul.addr %s82, 12
        %s84 = smul.addr %s83, 8
        %s85 = scalar_lea.vmem %s0, %s84
      $region20: #{kernel_construction.1} parent=15 // pred_fallthru
        _
    $region16: #{kernel_construction.1} parent=5 // pred_fallthru
      _
    %p86 = scmp.le.s32.totalorder 1, %s7
    %p87 = scmp.lt.s32.totalorder %s7, 3
    %p88 = pnand %p86, %p87
    %p89 = pneg %p88
    // Predicated region
    $region21: #{kernel_construction.1} parent=5 // pred_check
      _
    $region22: #{kernel_construction.1} parent=5 // pred_check_branch
      %91 = sbr.rel (%p88) target = $region24
    $region23: #{kernel_construction.1} parent=5 // pred_region
      %s92 = ssub.s32 %s7, 1
      %p93 = scmp.lt.s32.totalorder %s12, 1
      %s94 = scalar_select %p93, %s12, 1
      %s95 = smul.addr %s94, 12
      %s96 = smul.addr %s95, 8
      %s97 = scalar_lea.vmem %s0, %s96
      %p98 = pneg %p33
      %p99 = pneg %p30
      %p100 = pneg %p59
      %p101 = pneg %p56
      %p102 = scmp.lt.s32.totalorder %s12, 1
      %s103 = scalar_select %p102, %s12, 1
      %s104 = smul.addr %s103, 72
      %s105 = smul.addr %s104, 8
      %s106 = scalar_lea.vmem %s1, %s105
      %p107 = scmp.lt.s32.totalorder %s12, 1
      %s108 = scalar_select %p107, %s12, 1
      %s109 = smul.addr %s108, 12
      %s110 = smul.addr %s109, 8
      %s111 = scalar_lea.vmem %s0, %s110
      %p112 = scmp.lt.s32.totalorder %s12, 1
      %s113 = scalar_select %p112, %s12, 1
      %s114 = smul.addr %s113, 72
      %s115 = smul.addr %s114, 8
      %s116 = scalar_lea.vmem %s1, %s115
      %v117 = vld [vmem:[%s111] sm:$0xff]
      %v118 = vld [vmem:[%s111 + $0x8] sm:$0xff]
      %v119 = vld [vmem:[%s111 + $0x1] sm:$0xff]
      %v120 = vld [vmem:[%s111 + $0x9] sm:$0xff]
      %v121 = vld [vmem:[%s111 + $0x2] sm:$0xff]
      %v122 = vld [vmem:[%s111 + $0xa] sm:$0xff]
      %s123 = scalar_lea.vmem %s111, 24
      %v124 = vld [vmem:[%s123] sm:$0xff]
      %v125 = vld [vmem:[%s123 + $0x8] sm:$0xff]
      %v126 = vld [vmem:[%s123 + $0x1] sm:$0xff]
      %v127 = vld [vmem:[%s123 + $0x9] sm:$0xff]
      %v128 = vld [vmem:[%s123 + $0x2] sm:$0xff]
      %v129 = vld [vmem:[%s123 + $0xa] sm:$0xff]
      %s130 = scalar_lea.vmem %s111, 48
      %v131 = vld [vmem:[%s130] sm:$0xff]
      %v132 = vld [vmem:[%s130 + $0x8] sm:$0xff]
      %v133 = vld [vmem:[%s130 + $0x1] sm:$0xff]
      %v134 = vld [vmem:[%s130 + $0x9] sm:$0xff]
      %v135 = vld [vmem:[%s130 + $0x2] sm:$0xff]
      %v136 = vld [vmem:[%s130 + $0xa] sm:$0xff]
      %s137 = scalar_lea.vmem %s111, 72
      %v138 = vld [vmem:[%s137] sm:$0xff]
      %v139 = vld [vmem:[%s137 + $0x8] sm:$0xff]
      %v140 = vld [vmem:[%s137 + $0x1] sm:$0xff]
      %v141 = vld [vmem:[%s137 + $0x9] sm:$0xff]
      %v142 = vld [vmem:[%s137 + $0x2] sm:$0xff]
      %v143 = vld [vmem:[%s137 + $0xa] sm:$0xff]
      %146 = vrot.lane.b32.xlu0 %v117, 127
      %v147 = vpop.permute.xlu0 %146
      %148 = vrot.lane.b32.xlu0 %v118, 127
      %v149 = vpop.permute.xlu0 %148
      %v152 = vmax.f32 %v117, %v147
      %v153 = vmax.f32 %v118, %v149
      %154 = vrot.lane.b32.xlu0 %v117, 126
      %v155 = vpop.permute.xlu0 %154
      %156 = vrot.lane.b32.xlu0 %v118, 126
      %v157 = vpop.permute.xlu0 %156
      %v160 = vmax.f32 %v152, %v155
      %v161 = vmax.f32 %v153, %v157
      %v162 = vmax.f32 %v160, %v119
      %v163 = vmax.f32 %v161, %v120
      %166 = vrot.lane.b32.xlu0 %v119, 127
      %v167 = vpop.permute.xlu0 %166
      %168 = vrot.lane.b32.xlu0 %v120, 127
      %v169 = vpop.permute.xlu0 %168
      %v172 = vmax.f32 %v162, %v167
      %v173 = vmax.f32 %v163, %v169
      %174 = vrot.lane.b32.xlu0 %v119, 126
      %v175 = vpop.permute.xlu0 %174
      %176 = vrot.lane.b32.xlu0 %v120, 126
      %v177 = vpop.permute.xlu0 %176
      %v180 = vmax.f32 %v172, %v175
      %v181 = vmax.f32 %v173, %v177
      %v182 = vmax.f32 %v180, %v121
      %v183 = vmax.f32 %v181, %v122
      %186 = vrot.lane.b32.xlu0 %v121, 127
      %v187 = vpop.permute.xlu0 %186
      %188 = vrot.lane.b32.xlu0 %v122, 127
      %v189 = vpop.permute.xlu0 %188
      %v192 = vmax.f32 %v182, %v187
      %v193 = vmax.f32 %v183, %v189
      %194 = vrot.lane.b32.xlu0 %v121, 126
      %v195 = vpop.permute.xlu0 %194
      %196 = vrot.lane.b32.xlu0 %v122, 126
      %v197 = vpop.permute.xlu0 %196
      %v200 = vmax.f32 %v192, %v195
      %v201 = vmax.f32 %v193, %v197
      %v202 = vmax.f32 %v200, %v124
      %v203 = vmax.f32 %v201, %v125
      %206 = vrot.lane.b32.xlu0 %v124, 127
      %v207 = vpop.permute.xlu0 %206
      %208 = vrot.lane.b32.xlu0 %v125, 127
      %v209 = vpop.permute.xlu0 %208
      %v212 = vmax.f32 %v202, %v207
      %v213 = vmax.f32 %v203, %v209
      %214 = vrot.lane.b32.xlu0 %v124, 126
      %v215 = vpop.permute.xlu0 %214
      %216 = vrot.lane.b32.xlu0 %v125, 126
      %v217 = vpop.permute.xlu0 %216
      %v220 = vmax.f32 %v212, %v215
      %v221 = vmax.f32 %v213, %v217
      %v222 = vsub.f32 %v117, %v220
      %v223 = vsub.f32 %v118, %v221
      %v224 = vmul.f32 %v222, 1.442695
      %v225 = vpow.pop %v224
      %v226 = vmul.f32 %v223, 1.442695
      %v227 = vpow.pop %v226
      %230 = vrot.lane.b32.xlu0 %v220, 1
      %v231 = vpop.permute.xlu0 %230
      %232 = vrot.lane.b32.xlu0 %v221, 1
      %v233 = vpop.permute.xlu0 %232
      %v236 = vsub.f32 %v117, %v231
      %v237 = vsub.f32 %v118, %v233
      %v238 = vmul.f32 %v236, 1.442695
      %v239 = vpow.pop %v238
      %v240 = vmul.f32 %v237, 1.442695
      %v241 = vpow.pop %v240
      %242 = vrot.lane.b32.xlu0 %v220, 2
      %v243 = vpop.permute.xlu0 %242
      %244 = vrot.lane.b32.xlu0 %v221, 2
      %v245 = vpop.permute.xlu0 %244
      %v248 = vsub.f32 %v117, %v243
      %v249 = vsub.f32 %v118, %v245
      %v250 = vmul.f32 %v248, 1.442695
      %v251 = vpow.pop %v250
      %v252 = vmul.f32 %v249, 1.442695
      %v253 = vpow.pop %v252
      %v254 = vsub.f32 %v119, %v220
      %v255 = vsub.f32 %v120, %v221
      %v256 = vmul.f32 %v254, 1.442695
      %v257 = vpow.pop %v256
      %v258 = vmul.f32 %v255, 1.442695
      %v259 = vpow.pop %v258
      %v260 = vsub.f32 %v119, %v231
      %v261 = vsub.f32 %v120, %v233
      %v262 = vmul.f32 %v260, 1.442695
      %v263 = vpow.pop %v262
      %v264 = vmul.f32 %v261, 1.442695
      %v265 = vpow.pop %v264
      %v266 = vsub.f32 %v119, %v243
      %v267 = vsub.f32 %v120, %v245
      %v268 = vmul.f32 %v266, 1.442695
      %v269 = vpow.pop %v268
      %v270 = vmul.f32 %v267, 1.442695
      %v271 = vpow.pop %v270
      %v272 = vsub.f32 %v121, %v220
      %v273 = vsub.f32 %v122, %v221
      %v274 = vmul.f32 %v272, 1.442695
      %v275 = vpow.pop %v274
      %v276 = vmul.f32 %v273, 1.442695
      %v277 = vpow.pop %v276
      %v278 = vsub.f32 %v121, %v231
      %v279 = vsub.f32 %v122, %v233
      %v280 = vmul.f32 %v278, 1.442695
      %v281 = vpow.pop %v280
      %v282 = vmul.f32 %v279, 1.442695
      %v283 = vpow.pop %v282
      %v284 = vsub.f32 %v121, %v243
      %v285 = vsub.f32 %v122, %v245
      %v286 = vmul.f32 %v284, 1.442695
      %v287 = vpow.pop %v286
      %v288 = vmul.f32 %v285, 1.442695
      %v289 = vpow.pop %v288
      %v290 = vsub.f32 %v124, %v220
      %v291 = vsub.f32 %v125, %v221
      %v292 = vmul.f32 %v290, 1.442695
      %v293 = vpow.pop %v292
      %v294 = vmul.f32 %v291, 1.442695
      %v295 = vpow.pop %v294
      %v296 = vsub.f32 %v124, %v231
      %v297 = vsub.f32 %v125, %v233
      %v298 = vmul.f32 %v296, 1.442695
      %v299 = vpow.pop %v298
      %v300 = vmul.f32 %v297, 1.442695
      %v301 = vpow.pop %v300
      %v302 = vsub.f32 %v124, %v243
      %v303 = vsub.f32 %v125, %v245
      %v304 = vmul.f32 %v302, 1.442695
      %v305 = vpow.pop %v304
      %v306 = vmul.f32 %v303, 1.442695
      %v307 = vpow.pop %v306
      %310 = vrot.lane.b32.xlu0 %v239, 127
      %v311 = vpop.permute.xlu0 %310
      %312 = vrot.lane.b32.xlu0 %v241, 127
      %v313 = vpop.permute.xlu0 %312
      %v316 = vadd.f32 %v225, %v311
      %v317 = vadd.f32 %v227, %v313
      %320 = vrot.lane.b32.xlu0 %v251, 126
      %v321 = vpop.permute.xlu0 %320
      %322 = vrot.lane.b32.xlu0 %v253, 126
      %v323 = vpop.permute.xlu0 %322
      %v326 = vadd.f32 %v316, %v321
      %v327 = vadd.f32 %v317, %v323
      %v328 = vadd.f32 %v326, %v257
      %v329 = vadd.f32 %v327, %v259
      %332 = vrot.lane.b32.xlu0 %v263, 127
      %v333 = vpop.permute.xlu0 %332
      %334 = vrot.lane.b32.xlu0 %v265, 127
      %v335 = vpop.permute.xlu0 %334
      %v338 = vadd.f32 %v328, %v333
      %v339 = vadd.f32 %v329, %v335
      %342 = vrot.lane.b32.xlu0 %v269, 126
      %v343 = vpop.permute.xlu0 %342
      %344 = vrot.lane.b32.xlu0 %v271, 126
      %v345 = vpop.permute.xlu0 %344
      %v348 = vadd.f32 %v338, %v343
      %v349 = vadd.f32 %v339, %v345
      %v350 = vadd.f32 %v348, %v275
      %v351 = vadd.f32 %v349, %v277
      %354 = vrot.lane.b32.xlu0 %v281, 127
      %v355 = vpop.permute.xlu0 %354
      %356 = vrot.lane.b32.xlu0 %v283, 127
      %v357 = vpop.permute.xlu0 %356
      %v360 = vadd.f32 %v350, %v355
      %v361 = vadd.f32 %v351, %v357
      %364 = vrot.lane.b32.xlu0 %v287, 126
      %v365 = vpop.permute.xlu0 %364
      %366 = vrot.lane.b32.xlu0 %v289, 126
      %v367 = vpop.permute.xlu0 %366
      %v370 = vadd.f32 %v360, %v365
      %v371 = vadd.f32 %v361, %v367
      %v372 = vadd.f32 %v370, %v293
      %v373 = vadd.f32 %v371, %v295
      %376 = vrot.lane.b32.xlu0 %v299, 127
      %v377 = vpop.permute.xlu0 %376
      %378 = vrot.lane.b32.xlu0 %v301, 127
      %v379 = vpop.permute.xlu0 %378
      %v382 = vadd.f32 %v372, %v377
      %v383 = vadd.f32 %v373, %v379
      %386 = vrot.lane.b32.xlu0 %v305, 126
      %v387 = vpop.permute.xlu0 %386
      %388 = vrot.lane.b32.xlu0 %v307, 126
      %v389 = vpop.permute.xlu0 %388
      %v392 = vadd.f32 %v382, %v387
      %v393 = vadd.f32 %v383, %v389
      %v394 = vrcp.pop %v392
      %v395 = vrcp.pop %v393
      %v396 = vmul.f32 %v392, %v394
      %v397 = vmul.f32 %v393, %v395
      %v398 = vsub.f32 2.0, %v396
      %v399 = vsub.f32 2.0, %v397
      %v400 = vmul.f32 %v394, %v398
      %v401 = vmul.f32 %v395, %v399
      %v402 = vmul.f32 %v225, %v400
      %v403 = vmul.f32 %v227, %v401
      %vm404 = vcmask 130048
      %405 = vst.msk [vmem:[%s116] sm:$0xff] %vm404, %v402
      %406 = vst.msk [vmem:[%s116 + $0x8] sm:$0xff] %vm404, %v403
      %409 = vrot.lane.b32.xlu0 %v400, 1
      %v410 = vpop.permute.xlu0 %409
      %411 = vrot.lane.b32.xlu0 %v401, 1
      %v412 = vpop.permute.xlu0 %411
      %v415 = vmul.f32 %v239, %v410
      %v416 = vmul.f32 %v241, %v412
      %419 = vrot.lane.b32.xlu0 %v415, 127
      %v420 = vpop.permute.xlu0 %419
      %421 = vrot.lane.b32.xlu0 %v416, 127
      %v422 = vpop.permute.xlu0 %421
      %s425 = scalar_lea.vmem %s116, 16
      %426 = vst.msk [vmem:[%s425] sm:$0xff] %vm404, %v420
      %427 = vst.msk [vmem:[%s425 + $0x8] sm:$0xff] %vm404, %v422
      %428 = vrot.lane.b32.xlu0 %v400, 2
      %v429 = vpop.permute.xlu0 %428
      %430 = vrot.lane.b32.xlu0 %v401, 2
      %v431 = vpop.permute.xlu0 %430
      %v434 = vmul.f32 %v251, %v429
      %v435 = vmul.f32 %v253, %v431
      %438 = vrot.lane.b32.xlu0 %v434, 126
      %v439 = vpop.permute.xlu0 %438
      %440 = vrot.lane.b32.xlu0 %v435, 126
      %v441 = vpop.permute.xlu0 %440
      %s444 = scalar_lea.vmem %s116, 32
      %445 = vst.msk [vmem:[%s444] sm:$0xff] %vm404, %v439
      %446 = vst.msk [vmem:[%s444 + $0x8] sm:$0xff] %vm404, %v441
      %v447 = vmul.f32 %v257, %v400
      %v448 = vmul.f32 %v259, %v401
      %s449 = scalar_lea.vmem %s116, 48
      %450 = vst.msk [vmem:[%s449] sm:$0xff] %vm404, %v447
      %451 = vst.msk [vmem:[%s449 + $0x8] sm:$0xff] %vm404, %v448
      %v452 = vmul.f32 %v263, %v410
      %v453 = vmul.f32 %v265, %v412
      %456 = vrot.lane.b32.xlu0 %v452, 127
      %v457 = vpop.permute.xlu0 %456
      %458 = vrot.lane.b32.xlu0 %v453, 127
      %v459 = vpop.permute.xlu0 %458
      %s462 = scalar_lea.vmem %s116, 64
      %463 = vst.msk [vmem:[%s462] sm:$0xff] %vm404, %v457
      %464 = vst.msk [vmem:[%s462 + $0x8] sm:$0xff] %vm404, %v459
      %v465 = vmul.f32 %v269, %v429
      %v466 = vmul.f32 %v271, %v431
      %469 = vrot.lane.b32.xlu0 %v465, 126
      %v470 = vpop.permute.xlu0 %469
      %471 = vrot.lane.b32.xlu0 %v466, 126
      %v472 = vpop.permute.xlu0 %471
      %s475 = scalar_lea.vmem %s116, 80
      %476 = vst.msk [vmem:[%s475] sm:$0xff] %vm404, %v470
      %477 = vst.msk [vmem:[%s475 + $0x8] sm:$0xff] %vm404, %v472
      %v478 = vmul.f32 %v275, %v400
      %v479 = vmul.f32 %v277, %v401
      %s480 = scalar_lea.vmem %s116, 96
      %481 = vst.msk [vmem:[%s480] sm:$0xff] %vm404, %v478
      %482 = vst.msk [vmem:[%s480 + $0x8] sm:$0xff] %vm404, %v479
      %v483 = vmul.f32 %v281, %v410
      %v484 = vmul.f32 %v283, %v412
      %487 = vrot.lane.b32.xlu0 %v483, 127
      %v488 = vpop.permute.xlu0 %487
      %489 = vrot.lane.b32.xlu0 %v484, 127
      %v490 = vpop.permute.xlu0 %489
      %s493 = scalar_lea.vmem %s116, 112
      %494 = vst.msk [vmem:[%s493] sm:$0xff] %vm404, %v488
      %495 = vst.msk [vmem:[%s493 + $0x8] sm:$0xff] %vm404, %v490
      %v496 = vmul.f32 %v287, %v429
      %v497 = vmul.f32 %v289, %v431
      %500 = vrot.lane.b32.xlu0 %v496, 126
      %v501 = vpop.permute.xlu0 %500
      %502 = vrot.lane.b32.xlu0 %v497, 126
      %v503 = vpop.permute.xlu0 %502
      %s506 = scalar_lea.vmem %s116, 128
      %507 = vst.msk [vmem:[%s506] sm:$0xff] %vm404, %v501
      %508 = vst.msk [vmem:[%s506 + $0x8] sm:$0xff] %vm404, %v503
      %v509 = vmul.f32 %v293, %v400
      %v510 = vmul.f32 %v295, %v401
      %s511 = scalar_lea.vmem %s116, 144
      %512 = vst.msk [vmem:[%s511] sm:$0xff] %vm404, %v509
      %513 = vst.msk [vmem:[%s511 + $0x8] sm:$0xff] %vm404, %v510
      %v514 = vmul.f32 %v299, %v410
      %v515 = vmul.f32 %v301, %v412
      %518 = vrot.lane.b32.xlu0 %v514, 127
      %v519 = vpop.permute.xlu0 %518
      %520 = vrot.lane.b32.xlu0 %v515, 127
      %v521 = vpop.permute.xlu0 %520
      %s524 = scalar_lea.vmem %s116, 160
      %525 = vst.msk [vmem:[%s524] sm:$0xff] %vm404, %v519
      %526 = vst.msk [vmem:[%s524 + $0x8] sm:$0xff] %vm404, %v521
      %v527 = vmul.f32 %v305, %v429
      %v528 = vmul.f32 %v307, %v431
      %531 = vrot.lane.b32.xlu0 %v527, 126
      %v532 = vpop.permute.xlu0 %531
      %533 = vrot.lane.b32.xlu0 %v528, 126
      %v534 = vpop.permute.xlu0 %533
      %s537 = scalar_lea.vmem %s116, 176
      %538 = vst.msk [vmem:[%s537] sm:$0xff] %vm404, %v532
      %539 = vst.msk [vmem:[%s537 + $0x8] sm:$0xff] %vm404, %v534
      %542 = vrot.lane.b32.xlu0 %v126, 127
      %v543 = vpop.permute.xlu0 %542
      %544 = vrot.lane.b32.xlu0 %v127, 127
      %v545 = vpop.permute.xlu0 %544
      %v548 = vmax.f32 %v126, %v543
      %v549 = vmax.f32 %v127, %v545
      %550 = vrot.lane.b32.xlu0 %v126, 126
      %v551 = vpop.permute.xlu0 %550
      %552 = vrot.lane.b32.xlu0 %v127, 126
      %v553 = vpop.permute.xlu0 %552
      %v556 = vmax.f32 %v548, %v551
      %v557 = vmax.f32 %v549, %v553
      %v558 = vmax.f32 %v556, %v128
      %v559 = vmax.f32 %v557, %v129
      %562 = vrot.lane.b32.xlu0 %v128, 127
      %v563 = vpop.permute.xlu0 %562
      %564 = vrot.lane.b32.xlu0 %v129, 127
      %v565 = vpop.permute.xlu0 %564
      %v568 = vmax.f32 %v558, %v563
      %v569 = vmax.f32 %v559, %v565
      %570 = vrot.lane.b32.xlu0 %v128, 126
      %v571 = vpop.permute.xlu0 %570
      %572 = vrot.lane.b32.xlu0 %v129, 126
      %v573 = vpop.permute.xlu0 %572
      %v576 = vmax.f32 %v568, %v571
      %v577 = vmax.f32 %v569, %v573
      %v578 = vmax.f32 %v576, %v131
      %v579 = vmax.f32 %v577, %v132
      %582 = vrot.lane.b32.xlu0 %v131, 127
      %v583 = vpop.permute.xlu0 %582
      %584 = vrot.lane.b32.xlu0 %v132, 127
      %v585 = vpop.permute.xlu0 %584
      %v588 = vmax.f32 %v578, %v583
      %v589 = vmax.f32 %v579, %v585
      %590 = vrot.lane.b32.xlu0 %v131, 126
      %v591 = vpop.permute.xlu0 %590
      %592 = vrot.lane.b32.xlu0 %v132, 126
      %v593 = vpop.permute.xlu0 %592
      %v596 = vmax.f32 %v588, %v591
      %v597 = vmax.f32 %v589, %v593
      %v598 = vmax.f32 %v596, %v133
      %v599 = vmax.f32 %v597, %v134
      %602 = vrot.lane.b32.xlu0 %v133, 127
      %v603 = vpop.permute.xlu0 %602
      %604 = vrot.lane.b32.xlu0 %v134, 127
      %v605 = vpop.permute.xlu0 %604
      %v608 = vmax.f32 %v598, %v603
      %v609 = vmax.f32 %v599, %v605
      %610 = vrot.lane.b32.xlu0 %v133, 126
      %v611 = vpop.permute.xlu0 %610
      %612 = vrot.lane.b32.xlu0 %v134, 126
      %v613 = vpop.permute.xlu0 %612
      %v616 = vmax.f32 %v608, %v611
      %v617 = vmax.f32 %v609, %v613
      %v618 = vsub.f32 %v126, %v616
      %v619 = vsub.f32 %v127, %v617
      %v620 = vmul.f32 %v618, 1.442695
      %v621 = vpow.pop %v620
      %v622 = vmul.f32 %v619, 1.442695
      %v623 = vpow.pop %v622
      %626 = vrot.lane.b32.xlu0 %v616, 1
      %v627 = vpop.permute.xlu0 %626
      %628 = vrot.lane.b32.xlu0 %v617, 1
      %v629 = vpop.permute.xlu0 %628
      %v632 = vsub.f32 %v126, %v627
      %v633 = vsub.f32 %v127, %v629
      %v634 = vmul.f32 %v632, 1.442695
      %v635 = vpow.pop %v634
      %v636 = vmul.f32 %v633, 1.442695
      %v637 = vpow.pop %v636
      %638 = vrot.lane.b32.xlu0 %v616, 2
      %v639 = vpop.permute.xlu0 %638
      %640 = vrot.lane.b32.xlu0 %v617, 2
      %v641 = vpop.permute.xlu0 %640
      %v644 = vsub.f32 %v126, %v639
      %v645 = vsub.f32 %v127, %v641
      %v646 = vmul.f32 %v644, 1.442695
      %v647 = vpow.pop %v646
      %v648 = vmul.f32 %v645, 1.442695
      %v649 = vpow.pop %v648
      %v650 = vsub.f32 %v128, %v616
      %v651 = vsub.f32 %v129, %v617
      %v652 = vmul.f32 %v650, 1.442695
      %v653 = vpow.pop %v652
      %v654 = vmul.f32 %v651, 1.442695
      %v655 = vpow.pop %v654
      %v656 = vsub.f32 %v128, %v627
      %v657 = vsub.f32 %v129, %v629
      %v658 = vmul.f32 %v656, 1.442695
      %v659 = vpow.pop %v658
      %v660 = vmul.f32 %v657, 1.442695
      %v661 = vpow.pop %v660
      %v662 = vsub.f32 %v128, %v639
      %v663 = vsub.f32 %v129, %v641
      %v664 = vmul.f32 %v662, 1.442695
      %v665 = vpow.pop %v664
      %v666 = vmul.f32 %v663, 1.442695
      %v667 = vpow.pop %v666
      %v668 = vsub.f32 %v131, %v616
      %v669 = vsub.f32 %v132, %v617
      %v670 = vmul.f32 %v668, 1.442695
      %v671 = vpow.pop %v670
      %v672 = vmul.f32 %v669, 1.442695
      %v673 = vpow.pop %v672
      %v674 = vsub.f32 %v131, %v627
      %v675 = vsub.f32 %v132, %v629
      %v676 = vmul.f32 %v674, 1.442695
      %v677 = vpow.pop %v676
      %v678 = vmul.f32 %v675, 1.442695
      %v679 = vpow.pop %v678
      %v680 = vsub.f32 %v131, %v639
      %v681 = vsub.f32 %v132, %v641
      %v682 = vmul.f32 %v680, 1.442695
      %v683 = vpow.pop %v682
      %v684 = vmul.f32 %v681, 1.442695
      %v685 = vpow.pop %v684
      %v686 = vsub.f32 %v133, %v616
      %v687 = vsub.f32 %v134, %v617
      %v688 = vmul.f32 %v686, 1.442695
      %v689 = vpow.pop %v688
      %v690 = vmul.f32 %v687, 1.442695
      %v691 = vpow.pop %v690
      %v692 = vsub.f32 %v133, %v627
      %v693 = vsub.f32 %v134, %v629
      %v694 = vmul.f32 %v692, 1.442695
      %v695 = vpow.pop %v694
      %v696 = vmul.f32 %v693, 1.442695
      %v697 = vpow.pop %v696
      %v698 = vsub.f32 %v133, %v639
      %v699 = vsub.f32 %v134, %v641
      %v700 = vmul.f32 %v698, 1.442695
      %v701 = vpow.pop %v700
      %v702 = vmul.f32 %v699, 1.442695
      %v703 = vpow.pop %v702
      %706 = vrot.lane.b32.xlu0 %v635, 127
      %v707 = vpop.permute.xlu0 %706
      %708 = vrot.lane.b32.xlu0 %v637, 127
      %v709 = vpop.permute.xlu0 %708
      %v712 = vadd.f32 %v621, %v707
      %v713 = vadd.f32 %v623, %v709
      %716 = vrot.lane.b32.xlu0 %v647, 126
      %v717 = vpop.permute.xlu0 %716
      %718 = vrot.lane.b32.xlu0 %v649, 126
      %v719 = vpop.permute.xlu0 %718
      %v722 = vadd.f32 %v712, %v717
      %v723 = vadd.f32 %v713, %v719
      %v724 = vadd.f32 %v722, %v653
      %v725 = vadd.f32 %v723, %v655
      %728 = vrot.lane.b32.xlu0 %v659, 127
      %v729 = vpop.permute.xlu0 %728
      %730 = vrot.lane.b32.xlu0 %v661, 127
      %v731 = vpop.permute.xlu0 %730
      %v734 = vadd.f32 %v724, %v729
      %v735 = vadd.f32 %v725, %v731
      %738 = vrot.lane.b32.xlu0 %v665, 126
      %v739 = vpop.permute.xlu0 %738
      %740 = vrot.lane.b32.xlu0 %v667, 126
      %v741 = vpop.permute.xlu0 %740
      %v744 = vadd.f32 %v734, %v739
      %v745 = vadd.f32 %v735, %v741
      %v746 = vadd.f32 %v744, %v671
      %v747 = vadd.f32 %v745, %v673
      %750 = vrot.lane.b32.xlu0 %v677, 127
      %v751 = vpop.permute.xlu0 %750
      %752 = vrot.lane.b32.xlu0 %v679, 127
      %v753 = vpop.permute.xlu0 %752
      %v756 = vadd.f32 %v746, %v751
      %v757 = vadd.f32 %v747, %v753
      %760 = vrot.lane.b32.xlu0 %v683, 126
      %v761 = vpop.permute.xlu0 %760
      %762 = vrot.lane.b32.xlu0 %v685, 126
      %v763 = vpop.permute.xlu0 %762
      %v766 = vadd.f32 %v756, %v761
      %v767 = vadd.f32 %v757, %v763
      %v768 = vadd.f32 %v766, %v689
      %v769 = vadd.f32 %v767, %v691
      %772 = vrot.lane.b32.xlu0 %v695, 127
      %v773 = vpop.permute.xlu0 %772
      %774 = vrot.lane.b32.xlu0 %v697, 127
      %v775 = vpop.permute.xlu0 %774
      %v778 = vadd.f32 %v768, %v773
      %v779 = vadd.f32 %v769, %v775
      %782 = vrot.lane.b32.xlu0 %v701, 126
      %v783 = vpop.permute.xlu0 %782
      %784 = vrot.lane.b32.xlu0 %v703, 126
      %v785 = vpop.permute.xlu0 %784
      %v788 = vadd.f32 %v778, %v783
      %v789 = vadd.f32 %v779, %v785
      %v790 = vrcp.pop %v788
      %v791 = vrcp.pop %v789
      %v792 = vmul.f32 %v788, %v790
      %v793 = vmul.f32 %v789, %v791
      %v794 = vsub.f32 2.0, %v792
      %v795 = vsub.f32 2.0, %v793
      %v796 = vmul.f32 %v790, %v794
      %v797 = vmul.f32 %v791, %v795
      %v798 = vmul.f32 %v621, %v796
      %v799 = vmul.f32 %v623, %v797
      %s800 = scalar_lea.vmem %s116, 192
      %801 = vst.msk [vmem:[%s800] sm:$0xff] %vm404, %v798
      %802 = vst.msk [vmem:[%s800 + $0x8] sm:$0xff] %vm404, %v799
      %805 = vrot.lane.b32.xlu0 %v796, 1
      %v806 = vpop.permute.xlu0 %805
      %807 = vrot.lane.b32.xlu0 %v797, 1
      %v808 = vpop.permute.xlu0 %807
      %v811 = vmul.f32 %v635, %v806
      %v812 = vmul.f32 %v637, %v808
      %815 = vrot.lane.b32.xlu0 %v811, 127
      %v816 = vpop.permute.xlu0 %815
      %817 = vrot.lane.b32.xlu0 %v812, 127
      %v818 = vpop.permute.xlu0 %817
      %s821 = scalar_lea.vmem %s116, 208
      %822 = vst.msk [vmem:[%s821] sm:$0xff] %vm404, %v816
      %823 = vst.msk [vmem:[%s821 + $0x8] sm:$0xff] %vm404, %v818
      %824 = vrot.lane.b32.xlu0 %v796, 2
      %v825 = vpop.permute.xlu0 %824
      %826 = vrot.lane.b32.xlu0 %v797, 2
      %v827 = vpop.permute.xlu0 %826
      %v830 = vmul.f32 %v647, %v825
      %v831 = vmul.f32 %v649, %v827
      %834 = vrot.lane.b32.xlu0 %v830, 126
      %v835 = vpop.permute.xlu0 %834
      %836 = vrot.lane.b32.xlu0 %v831, 126
      %v837 = vpop.permute.xlu0 %836
      %s840 = scalar_lea.vmem %s116, 224
      %841 = vst.msk [vmem:[%s840] sm:$0xff] %vm404, %v835
      %842 = vst.msk [vmem:[%s840 + $0x8] sm:$0xff] %vm404, %v837
      %v843 = vmul.f32 %v653, %v796
      %v844 = vmul.f32 %v655, %v797
      %s845 = scalar_lea.vmem %s116, 240
      %846 = vst.msk [vmem:[%s845] sm:$0xff] %vm404, %v843
      %847 = vst.msk [vmem:[%s845 + $0x8] sm:$0xff] %vm404, %v844
      %v848 = vmul.f32 %v659, %v806
      %v849 = vmul.f32 %v661, %v808
      %852 = vrot.lane.b32.xlu0 %v848, 127
      %v853 = vpop.permute.xlu0 %852
      %854 = vrot.lane.b32.xlu0 %v849, 127
      %v855 = vpop.permute.xlu0 %854
      %s858 = scalar_lea.vmem %s116, 256
      %859 = vst.msk [vmem:[%s858] sm:$0xff] %vm404, %v853
      %860 = vst.msk [vmem:[%s858 + $0x8] sm:$0xff] %vm404, %v855
      %v861 = vmul.f32 %v665, %v825
      %v862 = vmul.f32 %v667, %v827
      %865 = vrot.lane.b32.xlu0 %v861, 126
      %v866 = vpop.permute.xlu0 %865
      %867 = vrot.lane.b32.xlu0 %v862, 126
      %v868 = vpop.permute.xlu0 %867
      %s871 = scalar_lea.vmem %s116, 272
      %872 = vst.msk [vmem:[%s871] sm:$0xff] %vm404, %v866
      %873 = vst.msk [vmem:[%s871 + $0x8] sm:$0xff] %vm404, %v868
      %v874 = vmul.f32 %v671, %v796
      %v875 = vmul.f32 %v673, %v797
      %s876 = scalar_lea.vmem %s116, 288
      %877 = vst.msk [vmem:[%s876] sm:$0xff] %vm404, %v874
      %878 = vst.msk [vmem:[%s876 + $0x8] sm:$0xff] %vm404, %v875
      %v879 = vmul.f32 %v677, %v806
      %v880 = vmul.f32 %v679, %v808
      %883 = vrot.lane.b32.xlu0 %v879, 127
      %v884 = vpop.permute.xlu0 %883
      %885 = vrot.lane.b32.xlu0 %v880, 127
      %v886 = vpop.permute.xlu0 %885
      %s889 = scalar_lea.vmem %s116, 304
      %890 = vst.msk [vmem:[%s889] sm:$0xff] %vm404, %v884
      %891 = vst.msk [vmem:[%s889 + $0x8] sm:$0xff] %vm404, %v886
      %v892 = vmul.f32 %v683, %v825
      %v893 = vmul.f32 %v685, %v827
      %896 = vrot.lane.b32.xlu0 %v892, 126
      %v897 = vpop.permute.xlu0 %896
      %898 = vrot.lane.b32.xlu0 %v893, 126
      %v899 = vpop.permute.xlu0 %898
      %s902 = scalar_lea.vmem %s116, 320
      %903 = vst.msk [vmem:[%s902] sm:$0xff] %vm404, %v897
      %904 = vst.msk [vmem:[%s902 + $0x8] sm:$0xff] %vm404, %v899
      %v905 = vmul.f32 %v689, %v796
      %v906 = vmul.f32 %v691, %v797
      %s907 = scalar_lea.vmem %s116, 336
      %908 = vst.msk [vmem:[%s907] sm:$0xff] %vm404, %v905
      %909 = vst.msk [vmem:[%s907 + $0x8] sm:$0xff] %vm404, %v906
      %v910 = vmul.f32 %v695, %v806
      %v911 = vmul.f32 %v697, %v808
      %914 = vrot.lane.b32.xlu0 %v910, 127
      %v915 = vpop.permute.xlu0 %914
      %916 = vrot.lane.b32.xlu0 %v911, 127
      %v917 = vpop.permute.xlu0 %916
      %s920 = scalar_lea.vmem %s116, 352
      %921 = vst.msk [vmem:[%s920] sm:$0xff] %vm404, %v915
      %922 = vst.msk [vmem:[%s920 + $0x8] sm:$0xff] %vm404, %v917
      %v923 = vmul.f32 %v701, %v825
      %v924 = vmul.f32 %v703, %v827
      %927 = vrot.lane.b32.xlu0 %v923, 126
      %v928 = vpop.permute.xlu0 %927
      %929 = vrot.lane.b32.xlu0 %v924, 126
      %v930 = vpop.permute.xlu0 %929
      %s933 = scalar_lea.vmem %s116, 368
      %934 = vst.msk [vmem:[%s933] sm:$0xff] %vm404, %v928
      %935 = vst.msk [vmem:[%s933 + $0x8] sm:$0xff] %vm404, %v930
      %938 = vrot.lane.b32.xlu0 %v135, 127
      %v939 = vpop.permute.xlu0 %938
      %940 = vrot.lane.b32.xlu0 %v136, 127
      %v941 = vpop.permute.xlu0 %940
      %v944 = vmax.f32 %v135, %v939
      %v945 = vmax.f32 %v136, %v941
      %946 = vrot.lane.b32.xlu0 %v135, 126
      %v947 = vpop.permute.xlu0 %946
      %948 = vrot.lane.b32.xlu0 %v136, 126
      %v949 = vpop.permute.xlu0 %948
      %v952 = vmax.f32 %v944, %v947
      %v953 = vmax.f32 %v945, %v949
      %v954 = vmax.f32 %v952, %v138
      %v955 = vmax.f32 %v953, %v139
      %958 = vrot.lane.b32.xlu0 %v138, 127
      %v959 = vpop.permute.xlu0 %958
      %960 = vrot.lane.b32.xlu0 %v139, 127
      %v961 = vpop.permute.xlu0 %960
      %v964 = vmax.f32 %v954, %v959
      %v965 = vmax.f32 %v955, %v961
      %966 = vrot.lane.b32.xlu0 %v138, 126
      %v967 = vpop.permute.xlu0 %966
      %968 = vrot.lane.b32.xlu0 %v139, 126
      %v969 = vpop.permute.xlu0 %968
      %v972 = vmax.f32 %v964, %v967
      %v973 = vmax.f32 %v965, %v969
      %v974 = vmax.f32 %v972, %v140
      %v975 = vmax.f32 %v973, %v141
      %978 = vrot.lane.b32.xlu0 %v140, 127
      %v979 = vpop.permute.xlu0 %978
      %980 = vrot.lane.b32.xlu0 %v141, 127
      %v981 = vpop.permute.xlu0 %980
      %v984 = vmax.f32 %v974, %v979
      %v985 = vmax.f32 %v975, %v981
      %986 = vrot.lane.b32.xlu0 %v140, 126
      %v987 = vpop.permute.xlu0 %986
      %988 = vrot.lane.b32.xlu0 %v141, 126
      %v989 = vpop.permute.xlu0 %988
      %v992 = vmax.f32 %v984, %v987
      %v993 = vmax.f32 %v985, %v989
      %v994 = vmax.f32 %v992, %v142
      %v995 = vmax.f32 %v993, %v143
      %998 = vrot.lane.b32.xlu0 %v142, 127
      %v999 = vpop.permute.xlu0 %998
      %1000 = vrot.lane.b32.xlu0 %v143, 127
      %v1001 = vpop.permute.xlu0 %1000
      %v1004 = vmax.f32 %v994, %v999
      %v1005 = vmax.f32 %v995, %v1001
      %1006 = vrot.lane.b32.xlu0 %v142, 126
      %v1007 = vpop.permute.xlu0 %1006
      %1008 = vrot.lane.b32.xlu0 %v143, 126
      %v1009 = vpop.permute.xlu0 %1008
      %v1012 = vmax.f32 %v1004, %v1007
      %v1013 = vmax.f32 %v1005, %v1009
      %v1014 = vsub.f32 %v135, %v1012
      %v1015 = vsub.f32 %v136, %v1013
      %v1016 = vmul.f32 %v1014, 1.442695
      %v1017 = vpow.pop %v1016
      %v1018 = vmul.f32 %v1015, 1.442695
      %v1019 = vpow.pop %v1018
      %1022 = vrot.lane.b32.xlu0 %v1012, 1
      %v1023 = vpop.permute.xlu0 %1022
      %1024 = vrot.lane.b32.xlu0 %v1013, 1
      %v1025 = vpop.permute.xlu0 %1024
      %v1028 = vsub.f32 %v135, %v1023
      %v1029 = vsub.f32 %v136, %v1025
      %v1030 = vmul.f32 %v1028, 1.442695
      %v1031 = vpow.pop %v1030
      %v1032 = vmul.f32 %v1029, 1.442695
      %v1033 = vpow.pop %v1032
      %1034 = vrot.lane.b32.xlu0 %v1012, 2
      %v1035 = vpop.permute.xlu0 %1034
      %1036 = vrot.lane.b32.xlu0 %v1013, 2
      %v1037 = vpop.permute.xlu0 %1036
      %v1040 = vsub.f32 %v135, %v1035
      %v1041 = vsub.f32 %v136, %v1037
      %v1042 = vmul.f32 %v1040, 1.442695
      %v1043 = vpow.pop %v1042
      %v1044 = vmul.f32 %v1041, 1.442695
      %v1045 = vpow.pop %v1044
      %v1046 = vsub.f32 %v138, %v1012
      %v1047 = vsub.f32 %v139, %v1013
      %v1048 = vmul.f32 %v1046, 1.442695
      %v1049 = vpow.pop %v1048
      %v1050 = vmul.f32 %v1047, 1.442695
      %v1051 = vpow.pop %v1050
      %v1052 = vsub.f32 %v138, %v1023
      %v1053 = vsub.f32 %v139, %v1025
      %v1054 = vmul.f32 %v1052, 1.442695
      %v1055 = vpow.pop %v1054
      %v1056 = vmul.f32 %v1053, 1.442695
      %v1057 = vpow.pop %v1056
      %v1058 = vsub.f32 %v138, %v1035
      %v1059 = vsub.f32 %v139, %v1037
      %v1060 = vmul.f32 %v1058, 1.442695
      %v1061 = vpow.pop %v1060
      %v1062 = vmul.f32 %v1059, 1.442695
      %v1063 = vpow.pop %v1062
      %v1064 = vsub.f32 %v140, %v1012
      %v1065 = vsub.f32 %v141, %v1013
      %v1066 = vmul.f32 %v1064, 1.442695
      %v1067 = vpow.pop %v1066
      %v1068 = vmul.f32 %v1065, 1.442695
      %v1069 = vpow.pop %v1068
      %v1070 = vsub.f32 %v140, %v1023
      %v1071 = vsub.f32 %v141, %v1025
      %v1072 = vmul.f32 %v1070, 1.442695
      %v1073 = vpow.pop %v1072
      %v1074 = vmul.f32 %v1071, 1.442695
      %v1075 = vpow.pop %v1074
      %v1076 = vsub.f32 %v140, %v1035
      %v1077 = vsub.f32 %v141, %v1037
      %v1078 = vmul.f32 %v1076, 1.442695
      %v1079 = vpow.pop %v1078
      %v1080 = vmul.f32 %v1077, 1.442695
      %v1081 = vpow.pop %v1080
      %v1082 = vsub.f32 %v142, %v1012
      %v1083 = vsub.f32 %v143, %v1013
      %v1084 = vmul.f32 %v1082, 1.442695
      %v1085 = vpow.pop %v1084
      %v1086 = vmul.f32 %v1083, 1.442695
      %v1087 = vpow.pop %v1086
      %v1088 = vsub.f32 %v142, %v1023
      %v1089 = vsub.f32 %v143, %v1025
      %v1090 = vmul.f32 %v1088, 1.442695
      %v1091 = vpow.pop %v1090
      %v1092 = vmul.f32 %v1089, 1.442695
      %v1093 = vpow.pop %v1092
      %v1094 = vsub.f32 %v142, %v1035
      %v1095 = vsub.f32 %v143, %v1037
      %v1096 = vmul.f32 %v1094, 1.442695
      %v1097 = vpow.pop %v1096
      %v1098 = vmul.f32 %v1095, 1.442695
      %v1099 = vpow.pop %v1098
      %1102 = vrot.lane.b32.xlu0 %v1031, 127
      %v1103 = vpop.permute.xlu0 %1102
      %1104 = vrot.lane.b32.xlu0 %v1033, 127
      %v1105 = vpop.permute.xlu0 %1104
      %v1108 = vadd.f32 %v1017, %v1103
      %v1109 = vadd.f32 %v1019, %v1105
      %1112 = vrot.lane.b32.xlu0 %v1043, 126
      %v1113 = vpop.permute.xlu0 %1112
      %1114 = vrot.lane.b32.xlu0 %v1045, 126
      %v1115 = vpop.permute.xlu0 %1114
      %v1118 = vadd.f32 %v1108, %v1113
      %v1119 = vadd.f32 %v1109, %v1115
      %v1120 = vadd.f32 %v1118, %v1049
      %v1121 = vadd.f32 %v1119, %v1051
      %1124 = vrot.lane.b32.xlu0 %v1055, 127
      %v1125 = vpop.permute.xlu0 %1124
      %1126 = vrot.lane.b32.xlu0 %v1057, 127
      %v1127 = vpop.permute.xlu0 %1126
      %v1130 = vadd.f32 %v1120, %v1125
      %v1131 = vadd.f32 %v1121, %v1127
      %1134 = vrot.lane.b32.xlu0 %v1061, 126
      %v1135 = vpop.permute.xlu0 %1134
      %1136 = vrot.lane.b32.xlu0 %v1063, 126
      %v1137 = vpop.permute.xlu0 %1136
      %v1140 = vadd.f32 %v1130, %v1135
      %v1141 = vadd.f32 %v1131, %v1137
      %v1142 = vadd.f32 %v1140, %v1067
      %v1143 = vadd.f32 %v1141, %v1069
      %1146 = vrot.lane.b32.xlu0 %v1073, 127
      %v1147 = vpop.permute.xlu0 %1146
      %1148 = vrot.lane.b32.xlu0 %v1075, 127
      %v1149 = vpop.permute.xlu0 %1148
      %v1152 = vadd.f32 %v1142, %v1147
      %v1153 = vadd.f32 %v1143, %v1149
      %1156 = vrot.lane.b32.xlu0 %v1079, 126
      %v1157 = vpop.permute.xlu0 %1156
      %1158 = vrot.lane.b32.xlu0 %v1081, 126
      %v1159 = vpop.permute.xlu0 %1158
      %v1162 = vadd.f32 %v1152, %v1157
      %v1163 = vadd.f32 %v1153, %v1159
      %v1164 = vadd.f32 %v1162, %v1085
      %v1165 = vadd.f32 %v1163, %v1087
      %1168 = vrot.lane.b32.xlu0 %v1091, 127
      %v1169 = vpop.permute.xlu0 %1168
      %1170 = vrot.lane.b32.xlu0 %v1093, 127
      %v1171 = vpop.permute.xlu0 %1170
      %v1174 = vadd.f32 %v1164, %v1169
      %v1175 = vadd.f32 %v1165, %v1171
      %1178 = vrot.lane.b32.xlu0 %v1097, 126
      %v1179 = vpop.permute.xlu0 %1178
      %1180 = vrot.lane.b32.xlu0 %v1099, 126
      %v1181 = vpop.permute.xlu0 %1180
      %v1184 = vadd.f32 %v1174, %v1179
      %v1185 = vadd.f32 %v1175, %v1181
      %v1186 = vrcp.pop %v1184
      %v1187 = vrcp.pop %v1185
      %v1188 = vmul.f32 %v1184, %v1186
      %v1189 = vmul.f32 %v1185, %v1187
      %v1190 = vsub.f32 2.0, %v1188
      %v1191 = vsub.f32 2.0, %v1189
      %v1192 = vmul.f32 %v1186, %v1190
      %v1193 = vmul.f32 %v1187, %v1191
      %v1194 = vmul.f32 %v1017, %v1192
      %v1195 = vmul.f32 %v1019, %v1193
      %s1196 = scalar_lea.vmem %s116, 384
      %1197 = vst.msk [vmem:[%s1196] sm:$0xff] %vm404, %v1194
      %1198 = vst.msk [vmem:[%s1196 + $0x8] sm:$0xff] %vm404, %v1195
      %1201 = vrot.lane.b32.xlu0 %v1192, 1
      %v1202 = vpop.permute.xlu0 %1201
      %1203 = vrot.lane.b32.xlu0 %v1193, 1
      %v1204 = vpop.permute.xlu0 %1203
      %v1207 = vmul.f32 %v1031, %v1202
      %v1208 = vmul.f32 %v1033, %v1204
      %1211 = vrot.lane.b32.xlu0 %v1207, 127
      %v1212 = vpop.permute.xlu0 %1211
      %1213 = vrot.lane.b32.xlu0 %v1208, 127
      %v1214 = vpop.permute.xlu0 %1213
      %s1217 = scalar_lea.vmem %s116, 400
      %1218 = vst.msk [vmem:[%s1217] sm:$0xff] %vm404, %v1212
      %1219 = vst.msk [vmem:[%s1217 + $0x8] sm:$0xff] %vm404, %v1214
      %1220 = vrot.lane.b32.xlu0 %v1192, 2
      %v1221 = vpop.permute.xlu0 %1220
      %1222 = vrot.lane.b32.xlu0 %v1193, 2
      %v1223 = vpop.permute.xlu0 %1222
      %v1226 = vmul.f32 %v1043, %v1221
      %v1227 = vmul.f32 %v1045, %v1223
      %1230 = vrot.lane.b32.xlu0 %v1226, 126
      %v1231 = vpop.permute.xlu0 %1230
      %1232 = vrot.lane.b32.xlu0 %v1227, 126
      %v1233 = vpop.permute.xlu0 %1232
      %s1236 = scalar_lea.vmem %s116, 416
      %1237 = vst.msk [vmem:[%s1236] sm:$0xff] %vm404, %v1231
      %1238 = vst.msk [vmem:[%s1236 + $0x8] sm:$0xff] %vm404, %v1233
      %v1239 = vmul.f32 %v1049, %v1192
      %v1240 = vmul.f32 %v1051, %v1193
      %s1241 = scalar_lea.vmem %s116, 432
      %1242 = vst.msk [vmem:[%s1241] sm:$0xff] %vm404, %v1239
      %1243 = vst.msk [vmem:[%s1241 + $0x8] sm:$0xff] %vm404, %v1240
      %v1244 = vmul.f32 %v1055, %v1202
      %v1245 = vmul.f32 %v1057, %v1204
      %1248 = vrot.lane.b32.xlu0 %v1244, 127
      %v1249 = vpop.permute.xlu0 %1248
      %1250 = vrot.lane.b32.xlu0 %v1245, 127
      %v1251 = vpop.permute.xlu0 %1250
      %s1254 = scalar_lea.vmem %s116, 448
      %1255 = vst.msk [vmem:[%s1254] sm:$0xff] %vm404, %v1249
      %1256 = vst.msk [vmem:[%s1254 + $0x8] sm:$0xff] %vm404, %v1251
      %v1257 = vmul.f32 %v1061, %v1221
      %v1258 = vmul.f32 %v1063, %v1223
      %1261 = vrot.lane.b32.xlu0 %v1257, 126
      %v1262 = vpop.permute.xlu0 %1261
      %1263 = vrot.lane.b32.xlu0 %v1258, 126
      %v1264 = vpop.permute.xlu0 %1263
      %s1267 = scalar_lea.vmem %s116, 464
      %1268 = vst.msk [vmem:[%s1267] sm:$0xff] %vm404, %v1262
      %1269 = vst.msk [vmem:[%s1267 + $0x8] sm:$0xff] %vm404, %v1264
      %v1270 = vmul.f32 %v1067, %v1192
      %v1271 = vmul.f32 %v1069, %v1193
      %s1272 = scalar_lea.vmem %s116, 480
      %1273 = vst.msk [vmem:[%s1272] sm:$0xff] %vm404, %v1270
      %1274 = vst.msk [vmem:[%s1272 + $0x8] sm:$0xff] %vm404, %v1271
      %v1275 = vmul.f32 %v1073, %v1202
      %v1276 = vmul.f32 %v1075, %v1204
      %1279 = vrot.lane.b32.xlu0 %v1275, 127
      %v1280 = vpop.permute.xlu0 %1279
      %1281 = vrot.lane.b32.xlu0 %v1276, 127
      %v1282 = vpop.permute.xlu0 %1281
      %s1285 = scalar_lea.vmem %s116, 496
      %1286 = vst.msk [vmem:[%s1285] sm:$0xff] %vm404, %v1280
      %1287 = vst.msk [vmem:[%s1285 + $0x8] sm:$0xff] %vm404, %v1282
      %v1288 = vmul.f32 %v1079, %v1221
      %v1289 = vmul.f32 %v1081, %v1223
      %1292 = vrot.lane.b32.xlu0 %v1288, 126
      %v1293 = vpop.permute.xlu0 %1292
      %1294 = vrot.lane.b32.xlu0 %v1289, 126
      %v1295 = vpop.permute.xlu0 %1294
      %s1298 = scalar_lea.vmem %s116, 512
      %1299 = vst.msk [vmem:[%s1298] sm:$0xff] %vm404, %v1293
      %1300 = vst.msk [vmem:[%s1298 + $0x8] sm:$0xff] %vm404, %v1295
      %v1301 = vmul.f32 %v1085, %v1192
      %v1302 = vmul.f32 %v1087, %v1193
      %s1303 = scalar_lea.vmem %s116, 528
      %1304 = vst.msk [vmem:[%s1303] sm:$0xff] %vm404, %v1301
      %1305 = vst.msk [vmem:[%s1303 + $0x8] sm:$0xff] %vm404, %v1302
      %v1306 = vmul.f32 %v1091, %v1202
      %v1307 = vmul.f32 %v1093, %v1204
      %1310 = vrot.lane.b32.xlu0 %v1306, 127
      %v1311 = vpop.permute.xlu0 %1310
      %1312 = vrot.lane.b32.xlu0 %v1307, 127
      %v1313 = vpop.permute.xlu0 %1312
      %s1316 = scalar_lea.vmem %s116, 544
      %1317 = vst.msk [vmem:[%s1316] sm:$0xff] %vm404, %v1311
      %1318 = vst.msk [vmem:[%s1316 + $0x8] sm:$0xff] %vm404, %v1313
      %v1319 = vmul.f32 %v1097, %v1221
      %v1320 = vmul.f32 %v1099, %v1223
      %1323 = vrot.lane.b32.xlu0 %v1319, 126
      %v1324 = vpop.permute.xlu0 %1323
      %1325 = vrot.lane.b32.xlu0 %v1320, 126
      %v1326 = vpop.permute.xlu0 %1325
      %s1329 = scalar_lea.vmem %s116, 560
      %1330 = vst.msk [vmem:[%s1329] sm:$0xff] %vm404, %v1324
      %1331 = vst.msk [vmem:[%s1329 + $0x8] sm:$0xff] %vm404, %v1326
      %p1332 = scmp.lt.s32.totalorder %s12, 1
      %s1333 = scalar_select %p1332, %s12, 1
      %s1334 = smul.addr %s1333, 72
      %s1335 = smul.addr %s1334, 8
      %s1336 = scalar_lea.vmem %s1, %s1335
      // Predicated region
      $region25: #{kernel_construction.1} parent=23 // pred_check
        %p1337 = pneg %p56
      $region26: #{kernel_construction.1} parent=23 // pred_check_branch
        %1339 = sbr.rel (%p1337) target = $region28
      $region27: #{kernel_construction.1} parent=23 // pred_region
        _
      $region28: #{kernel_construction.1} parent=23 // pred_fallthru
        _
    $region24: #{kernel_construction.1} parent=5 // pred_fallthru
      _
    %p1340 = scmp.le.s32.totalorder 2, %s7
    // Predicated region
    $region29: #{kernel_construction.1} parent=5 // pred_check
      %p1341 = pneg %p1340
    $region30: #{kernel_construction.1} parent=5 // pred_check_branch
      %1343 = sbr.rel (%p1341) target = $region32
    $region31: #{kernel_construction.1} parent=5 // pred_region
      %s1344 = ssub.s32 %s7, 2
      // Predicated region
      $region33: #{kernel_construction.1} parent=31 // pred_check
        %p1345 = pneg %p62
      $region34: #{kernel_construction.1} parent=31 // pred_check_branch
        %1347 = sbr.rel (%p1345) target = $region36
      $region35: #{kernel_construction.1} parent=31 // pred_region
        %p1348 = scmp.lt.s32.totalorder %s13, 1
        %s1349 = scalar_select %p1348, %s13, 1
        %s1350 = smul.addr %s1349, 72
        %s1351 = smul.addr %s1350, 8
        %s1352 = scalar_lea.vmem %s1, %s1351
      $region36: #{kernel_construction.1} parent=31 // pred_fallthru
        _
    $region32: #{kernel_construction.1} parent=5 // pred_fallthru
      _
  $region6: #{kernel_construction.1} parent=0 // loop_footer
    %s11 = sadd.s32 1, %s7
  $region7: #{kernel_construction.1} parent=0 // loop_footer_branch
    %6 = sbr.rel target = $region3
  $region8: #{kernel_construction.1} parent=0 // loop_exit
    _

</llo_original>
